<compile_context>
chip_gen: v7x
topology: tpu7x:2x2x1
jax: 0.10.0
libtpu: 0.0.40
codegen_flags: <defaults>
</compile_context>

<pallas_src>
import math
import jax
import jax.numpy as jnp
from jax.experimental import pallas as pl
from jax.experimental.pallas import tpu as pltpu


VMEM_LIMIT = 32 * 1024 * 1024  # explicit scoped-VMEM budget (safe on v5e/v6e/v7x)


# ----------------------------- Pallas kernels ------------------------------

def _encoder_gn_kernel(sub_ref, w0_ref, w1_ref, out_ref, sum_ref, sq_ref):
    # sub : [1, step, S] f32   (S = K+1 sub-frames of the mixture, lane-dense)
    # w0/w1: [N, step] bf16    (halves of the conv1d_U weight)
    # out : [1, N, K] bf16     (relu(conv), lane-dense K)
    # sum/sq: [1, 8, 128] f32  (per-batch GroupNorm statistics, scalar bcast)
    K = out_ref.shape[-1]
    sub = sub_ref[0]                                   # [step, S] f32
    a = sub[:, :K].astype(jnp.bfloat16)                # frame k, first half
    b = sub[:, 1:K + 1].astype(jnp.bfloat16)           # frame k, second half
    acc = jnp.dot(w0_ref[...], a, preferred_element_type=jnp.float32)
    acc = acc + jnp.dot(w1_ref[...], b, preferred_element_type=jnp.float32)
    y = jnp.maximum(acc, 0.0)                          # [N, K] f32
    out_ref[0] = y.astype(out_ref.dtype)
    # GroupNorm(1, N) stats fused here, in f32, before the bf16 store.
    sum_ref[...] = jnp.zeros_like(sum_ref) + jnp.sum(y)
    sq_ref[...] = jnp.zeros_like(sq_ref) + jnp.sum(y * y)


def _sep_dec_kernel(x_ref, weff_ref, beff_ref, vproj_ref, wint_ref, wdec_ref,
                    main_ref, tail_ref):
    # x    : [1, N, K] bf16 encoder output
    # weff : [1, N, N] bf16 = (W_av_x @ W_bottleneck) * GroupNorm scale (per batch)
    # beff : [1, N, 1] f32  = folded GroupNorm shift + av_conv bias
    # vproj: [1, N, Tv] bf16 = W_av_v @ visual  (per batch)
    # wint : [Tv, K] bf16 linear-interpolation matrix
    # wdec : [L, N] bf16 decoder basis_signals weight
    # main : [1, step, K] f32 overlap-added output sub-frames 0..K-1
    # tail : [1, step, 1] f32 final output sub-frame K
    x = x_ref[0]                                       # [N, K] bf16
    z = jnp.dot(weff_ref[0], x, preferred_element_type=jnp.float32)
    z = z + jnp.dot(vproj_ref[0], wint_ref[...], preferred_element_type=jnp.float32)
    z = z + beff_ref[0]                                # [N, K] f32

    # TODO(synk): Dual_Path_Model / SBFLASHBlock_DualA masknet source was not
    # provided; only a ReLU mask head is applied instead of the dual-path stack.
    mask = jnp.maximum(z, 0.0)

    est = (x.astype(jnp.float32) * mask).astype(jnp.bfloat16)          # [N, K]
    frames = jnp.dot(wdec_ref[...], est, preferred_element_type=jnp.float32)  # [L, K]

    step = main_ref.shape[1]
    half_a = frames[:step, :]                          # frame first halves
    half_b = frames[step:, :]                          # frame second halves
    # overlap_and_add with frame_step = L/2:
    #   out_sub[:, s] = half_a[:, s] + half_b[:, s-1],  out_sub[:, K] = half_b[:, K-1]
    zero_col = jnp.zeros((step, 1), jnp.float32)
    shifted_b = jnp.concatenate([zero_col, half_b[:, :-1]], axis=1)    # [step, K]
    main_ref[0] = half_a + shifted_b
    tail_ref[0] = half_b[:, -1:]


# ------------------------------ JAX glue -----------------------------------

def _interp_matrix(t_in, t_out):
    # F.interpolate(mode='linear', align_corners=False) as a [t_in, t_out] matrix.
    k = jnp.arange(t_out, dtype=jnp.float32)
    src = jnp.clip((k + 0.5) * (t_in / t_out) - 0.5, 0.0, t_in - 1)
    i0 = jnp.floor(src).astype(jnp.int32)
    i1 = jnp.minimum(i0 + 1, t_in - 1)
    w = src - i0.astype(jnp.float32)
    cols = jnp.arange(t_out)
    m = jnp.zeros((t_in, t_out), jnp.float32)
    m = m.at[i0, cols].add(1.0 - w)
    m = m.at[i1, cols].add(w)
    return m


def _compiler_params():
    return pltpu.CompilerParams(dimension_semantics=("parallel",),
                                vmem_limit_bytes=VMEM_LIMIT)


def mossformer_forward(mixture, visual, params, L):
    # mixture: [M, T] f32, visual: [M, E, Tv] f32 (visual embeddings)
    M, T = mixture.shape
    step = L // 2
    assert T % step == 0, "T must be a multiple of L//2 for this implementation"
    S = T // step
    K = S - 1
    N = params['w_enc'].shape[0]
    E, Tv = visual.shape[1], visual.shape[2]

    # ---------------- encoder + fused GroupNorm stats (Pallas) ----------------
    sub_t = mixture.reshape(M, S, step).transpose(0, 2, 1)     # [M, step, S]
    w0 = params['w_enc'][:, :step].astype(jnp.bfloat16)        # [N, step]
    w1 = params['w_enc'][:, step:].astype(jnp.bfloat16)        # [N, step]

    enc_flops = 2 * M * K * N * L + 3 * M * N * K
    enc_bytes = M * step * S * 4 + 2 * N * step * 2 + M * N * K * 2 + M * 8 * 128 * 8

    mixture_w, sums, sqs = pl.pallas_call(
        _encoder_gn_kernel,
        grid=(M,),
        in_specs=[
            pl.BlockSpec((1, step, S), lambda b: (b, 0, 0)),
            pl.BlockSpec((N, step), lambda b: (0, 0)),
            pl.BlockSpec((N, step), lambda b: (0, 0)),
        ],
        out_specs=[
            pl.BlockSpec((1, N, K), lambda b: (b, 0, 0)),
            pl.BlockSpec((1, 8, 128), lambda b: (b, 0, 0)),
            pl.BlockSpec((1, 8, 128), lambda b: (b, 0, 0)),
        ],
        out_shape=[
            jax.ShapeDtypeStruct((M, N, K), jnp.bfloat16),
            jax.ShapeDtypeStruct((M, 8, 128), jnp.float32),
            jax.ShapeDtypeStruct((M, 8, 128), jnp.float32),
        ],
        compiler_params=_compiler_params(),
        cost_estimate=pl.CostEstimate(flops=enc_flops, transcendentals=0,
                                      bytes_accessed=enc_bytes),
    )(sub_t, w0, w1)

    # -------- tiny per-batch weight/bias folds (weight-sized XLA only) --------
    cnt = float(N * K)
    mu = sums[:, 0, 0] / cnt                                    # [M]
    var = jnp.maximum(sqs[:, 0, 0] / cnt - mu * mu, 0.0)
    rstd = jax.lax.rsqrt(var + 1e-8)
    scale = rstd[:, None] * params['gn_w'][None, :]             # [M, N]
    shift = params['gn_b'][None, :] - mu[:, None] * scale       # [M, N]

    # bottleneck_conv1x1 has no bias -> nothing dropped by this fold.
    w_fold = params['w_av_x'] @ params['w_bottleneck']          # [N, N] f32
    w_eff = (w_fold[None, :, :] * scale[:, None, :]).astype(jnp.bfloat16)  # [M,N,N]
    b_eff = (jnp.einsum('ij,mj->mi', w_fold, shift)[:, :, None]
             + params['b_av'][None, :, :])                      # [M, N, 1] f32

    vproj = jnp.einsum('ne,met->mnt', params['w_av_v'], visual).astype(jnp.bfloat16)
    w_interp = _interp_matrix(Tv, K).astype(jnp.bfloat16)       # [Tv, K]
    w_dec = params['w_dec'].astype(jnp.bfloat16)                # [L, N]

    # ----------- fused separator + decoder + overlap-add (Pallas) -------------
    dec_flops = 2 * M * K * N * (N + Tv + L) + 8 * M * N * K
    dec_bytes = (M * N * K * 2 + Tv * K * 2 + M * (N * N + N * Tv) * 2
                 + M * N * 4 + M * step * (K + 1) * 4 + L * N * 2)

    main, tail = pl.pallas_call(
        _sep_dec_kernel,
        grid=(M,),
        in_specs=[
            pl.BlockSpec((1, N, K), lambda b: (b, 0, 0)),
            pl.BlockSpec((1, N, N), lambda b: (b, 0, 0)),
            pl.BlockSpec((1, N, 1), lambda b: (b, 0, 0)),
            pl.BlockSpec((1, N, Tv), lambda b: (b, 0, 0)),
            pl.BlockSpec((Tv, K), lambda b: (0, 0)),
            pl.BlockSpec((L, N), lambda b: (0, 0)),
        ],
        out_specs=[
            pl.BlockSpec((1, step, K), lambda b: (b, 0, 0)),
            pl.BlockSpec((1, step, 1), lambda b: (b, 0, 0)),
        ],
        out_shape=[
            jax.ShapeDtypeStruct((M, step, K), jnp.float32),
            jax.ShapeDtypeStruct((M, step, 1), jnp.float32),
        ],
        compiler_params=_compiler_params(),
        cost_estimate=pl.CostEstimate(flops=dec_flops, transcendentals=0,
                                      bytes_accessed=dec_bytes),
    )(mixture_w, w_eff, b_eff, vproj, w_interp, w_dec)

    # Final assembly of the overlap-added sub-frames: tiny concat + transpose
    # (no scatter-adds; the frame-overlap sum already happened in-kernel).
    out_sub = jnp.concatenate([main, tail], axis=2)             # [M, step, S]
    est_source = out_sub.transpose(0, 2, 1).reshape(M, S * step)

    T_conv = est_source.shape[-1]
    if T_conv < T:
        est_source = jnp.pad(est_source, ((0, 0), (0, T - T_conv)))
    elif T_conv > T:
        est_source = est_source[:, :T]
    return est_source                                           # [M, T]


# ------------------------------ params -------------------------------------

def _xavier_normal(key, shape, fan_in, fan_out):
    std = math.sqrt(2.0 / (fan_in + fan_out))
    return std * jax.random.normal(key, shape, dtype=jnp.float32)


def init_params(key, N, L, E):
    ks = jax.random.split(key, 6)
    return {
        # Encoder conv1d_U weight [N, 1, L] -> squeezed [N, L]
        'w_enc': _xavier_normal(ks[0], (N, L), L, N * L),
        # GroupNorm(1, N) affine (dim<=1 -> default init ones / zeros)
        'gn_w': jnp.ones((N,), jnp.float32),
        'gn_b': jnp.zeros((N,), jnp.float32),
        # bottleneck_conv1x1 (bias=False): [N, N, 1] -> [N, N]
        'w_bottleneck': _xavier_normal(ks[1], (N, N), N, N),
        # av_conv: [N, N+E, 1] split into audio / visual halves, plus bias
        'w_av_x': _xavier_normal(ks[2], (N, N), N + E, N),
        'w_av_v': _xavier_normal(ks[3], (N, E), N + E, N),
        'b_av': (1.0 / math.sqrt(N + E)) *
                jax.random.normal(ks[4], (N, 1), dtype=jnp.float32),
        # Decoder basis_signals: Linear(N, L, bias=False) weight [L, N]
        'w_dec': _xavier_normal(ks[5], (L, N), N, L),
    }


# ------------------------------ main ----------------------------------------

if __name__ == "__main__":
    # Small, module-consistent shapes.  Full-K blocks -> grid (M,) per kernel,
    # M = 2 parallel steps keeps both v7x TensorCores busy.
    M = 2           # batch
    L = 16          # encoder_kernel_size
    N = 32          # encoder_out_nchannels
    E = 8           # visual emb_size
    Tv = 16         # visual frames
    K = 1024        # encoder frames
    T = (K + 1) * (L // 2)   # 8200 samples

    key = jax.random.PRNGKey(0)
    k_mix, k_vis, k_par = jax.random.split(key, 3)
    mixture = jax.random.normal(k_mix, (M, T), dtype=jnp.float32)
    # TODO(synk): Visual_encoder (ref_encoder) source not provided; visual
    # embeddings [M, E, Tv] are taken directly as input.
    visual = jax.random.normal(k_vis, (M, E, Tv), dtype=jnp.float32)
    params = init_params(k_par, N, L, E)

    fwd = jax.jit(mossformer_forward, static_argnums=(3,))
    est_source = jax.block_until_ready(fwd(mixture, visual, params, L))

    assert est_source.shape == (M, T), est_source.shape
    assert bool(jnp.all(jnp.isfinite(est_source)))
    print("KERNEL_OK")
</pallas_src>

<mosaic_0001>
module attributes {stable_mosaic.version = 11 : i64} {
  func.func private @main(%arg0: i32) attributes {dimension_semantics = [#tpu.dimension_semantics<core_parallel>], iteration_bounds = array<i64: 2>, tpu.core_type = #tpu.core_type<sc_scalar_subcore>, window_params = []} {
    return
  }
}

module attributes {stable_mosaic.version = 11 : i64} {
  func.func private @main(%arg0: i32) attributes {dimension_semantics = [#tpu.dimension_semantics<core_parallel>], iteration_bounds = array<i64: 2>, tpu.core_type = #tpu.core_type<sc_scalar_subcore>, window_params = []} {
    return
  }
}

module attributes {stable_mosaic.version = 11 : i64} {
  func.func @_encoder_gn_kernel(%arg0: i32, %arg1: memref<1x8x1025xf32, #tpu.memory_space<vmem>>, %arg2: memref<32x8xbf16, #tpu.memory_space<vmem>>, %arg3: memref<32x8xbf16, #tpu.memory_space<vmem>>, %arg4: memref<1x32x1024xbf16, #tpu.memory_space<vmem>>, %arg5: memref<1x8x128xf32, #tpu.memory_space<vmem>>, %arg6: memref<1x8x128xf32, #tpu.memory_space<vmem>>) attributes {dimension_semantics = [#tpu.dimension_semantics<parallel>], iteration_bounds = array<i64: 2>, scalar_prefetch = 0 : i64, scratch_operands = 0 : i64, tpu.core_type = #tpu.core_type<tc>, window_params = [{transform_indices = @transform_0, window_bounds = array<i64: 1, 8, 1025>}, {pipeline_mode = #tpu.pipeline_mode<synchronous>, transform_indices = @transform_1, window_bounds = array<i64: 32, 8>}, {pipeline_mode = #tpu.pipeline_mode<synchronous>, transform_indices = @transform_2, window_bounds = array<i64: 32, 8>}, {transform_indices = @transform_3, window_bounds = array<i64: 1, 32, 1024>}, {transform_indices = @transform_4, window_bounds = array<i64: 1, 8, 128>}, {transform_indices = @transform_5, window_bounds = array<i64: 1, 8, 128>}]} {
    %c0 = arith.constant 0 : index
    %c0_0 = arith.constant 0 : index
    %c0_1 = arith.constant 0 : index
    %0 = vector.load %arg1[%c0, %c0_0, %c0_1] : memref<1x8x1025xf32, #tpu.memory_space<vmem>>, vector<1x8x1025xf32>
    %1 = vector.shape_cast %0 : vector<1x8x1025xf32> to vector<8x1025xf32>
    %2 = vector.extract_strided_slice %1 {offsets = [0, 0], sizes = [8, 1024], strides = [1, 1]} : vector<8x1025xf32> to vector<8x1024xf32>
    %3 = arith.truncf %2 : vector<8x1024xf32> to vector<8x1024xbf16>
    %4 = vector.extract_strided_slice %1 {offsets = [0, 1], sizes = [8, 1024], strides = [1, 1]} : vector<8x1025xf32> to vector<8x1024xf32>
    %5 = arith.truncf %4 : vector<8x1024xf32> to vector<8x1024xbf16>
    %c0_2 = arith.constant 0 : index
    %c0_3 = arith.constant 0 : index
    %6 = vector.load %arg2[%c0_2, %c0_3] : memref<32x8xbf16, #tpu.memory_space<vmem>>, vector<32x8xbf16>
    %cst = arith.constant dense<0.000000e+00> : vector<32x1024xf32>
    %7 = tpu.matmul %6, %3, %cst {dimension_numbers = #tpu.dot_dimension_numbers<[1], [0], [0], [1], [0, 0, 1, 1], [], []>} : vector<32x8xbf16>, vector<8x1024xbf16>, vector<32x1024xf32> -> vector<32x1024xf32>
    %c0_4 = arith.constant 0 : index
    %c0_5 = arith.constant 0 : index
    %8 = vector.load %arg3[%c0_4, %c0_5] : memref<32x8xbf16, #tpu.memory_space<vmem>>, vector<32x8xbf16>
    %cst_6 = arith.constant dense<0.000000e+00> : vector<32x1024xf32>
    %9 = tpu.matmul %8, %5, %cst_6 {dimension_numbers = #tpu.dot_dimension_numbers<[1], [0], [0], [1], [0, 0, 1, 1], [], []>} : vector<32x8xbf16>, vector<8x1024xbf16>, vector<32x1024xf32> -> vector<32x1024xf32>
    %10 = arith.addf %7, %9 : vector<32x1024xf32>
    %cst_7 = arith.constant 0.000000e+00 : f32
    %11 = vector.broadcast %cst_7 : f32 to vector<32x1024xf32>
    %12 = arith.maximumf %10, %11 : vector<32x1024xf32>
    %13 = arith.truncf %12 : vector<32x1024xf32> to vector<32x1024xbf16>
    %c0_8 = arith.constant 0 : index
    %c0_9 = arith.constant 0 : index
    %c0_10 = arith.constant 0 : index
    %14 = vector.load %arg4[%c0_8, %c0_9, %c0_10] : memref<1x32x1024xbf16, #tpu.memory_space<vmem>>, vector<1x32x1024xbf16>
    %15 = vector.shape_cast %14 : vector<1x32x1024xbf16> to vector<32x1024xbf16>
    %16 = vector.shape_cast %13 : vector<32x1024xbf16> to vector<1x32x1024xbf16>
    tpu.vector_store %arg4[%c0_8, %c0_9, %c0_10], %16 {strides = array<i32>} : memref<1x32x1024xbf16, #tpu.memory_space<vmem>>, vector<1x32x1024xbf16>,
    %cst_11 = arith.constant 0.000000e+00 : f32
    %17 = vector.broadcast %cst_11 : f32 to vector<1x8x128xf32>
    %18 = vector.shape_cast %12 : vector<32x1024xf32> to vector<1x32x1024xf32>
    %cst_12 = arith.constant dense<0.000000e+00> : vector<1xf32>
    %19 = vector.multi_reduction <add>, %18, %cst_12 [1, 2] : vector<1x32x1024xf32> to vector<1xf32>
    %20 = vector.shape_cast %19 : vector<1xf32> to vector<1x1x1xf32>
    %21 = vector.extract %20[0, 0, 0] : f32 from vector<1x1x1xf32>
    %22 = vector.broadcast %21 : f32 to vector<1x8x128xf32>
    %23 = arith.addf %17, %22 : vector<1x8x128xf32>
    %c0_13 = arith.constant 0 : index
    %c0_14 = arith.constant 0 : index
    %c0_15 = arith.constant 0 : index
    %24 = vector.load %arg5[%c0_13, %c0_14, %c0_15] : memref<1x8x128xf32, #tpu.memory_space<vmem>>, vector<1x8x128xf32>
    tpu.vector_store %arg5[%c0_13, %c0_14, %c0_15], %23 {strides = array<i32>} : memref<1x8x128xf32, #tpu.memory_space<vmem>>, vector<1x8x128xf32>,
    %cst_16 = arith.constant 0.000000e+00 : f32
    %25 = vector.broadcast %cst_16 : f32 to vector<1x8x128xf32>
    %26 = arith.mulf %12, %12 : vector<32x1024xf32>
    %27 = vector.shape_cast %26 : vector<32x1024xf32> to vector<1x32x1024xf32>
    %cst_17 = arith.constant dense<0.000000e+00> : vector<1xf32>
    %28 = vector.multi_reduction <add>, %27, %cst_17 [1, 2] : vector<1x32x1024xf32> to vector<1xf32>
    %29 = vector.shape_cast %28 : vector<1xf32> to vector<1x1x1xf32>
    %30 = vector.extract %29[0, 0, 0] : f32 from vector<1x1x1xf32>
    %31 = vector.broadcast %30 : f32 to vector<1x8x128xf32>
    %32 = arith.addf %25, %31 : vector<1x8x128xf32>
    %c0_18 = arith.constant 0 : index
    %c0_19 = arith.constant 0 : index
    %c0_20 = arith.constant 0 : index
    %33 = vector.load %arg6[%c0_18, %c0_19, %c0_20] : memref<1x8x128xf32, #tpu.memory_space<vmem>>, vector<1x8x128xf32>
    tpu.vector_store %arg6[%c0_18, %c0_19, %c0_20], %32 {strides = array<i32>} : memref<1x8x128xf32, #tpu.memory_space<vmem>>, vector<1x8x128xf32>,
    return
  }
  func.func @transform_0(%arg0: i32) -> (i32, i32, i32) {
    %c0_i32 = arith.constant 0 : i32
    %c0_i32_0 = arith.constant 0 : i32
    %c0_i32_1 = arith.constant 0 : i32
    return %arg0, %c0_i32, %c0_i32_0 : i32, i32, i32
  }
  func.func @transform_1(%arg0: i32) -> (i32, i32) {
    %c0_i32 = arith.constant 0 : i32
    %c0_i32_0 = arith.constant 0 : i32
    %c0_i32_1 = arith.constant 0 : i32
    return %c0_i32, %c0_i32_0 : i32, i32
  }
  func.func @transform_2(%arg0: i32) -> (i32, i32) {
    %c0_i32 = arith.constant 0 : i32
    %c0_i32_0 = arith.constant 0 : i32
    %c0_i32_1 = arith.constant 0 : i32
    return %c0_i32, %c0_i32_0 : i32, i32
  }
  func.func @transform_3(%arg0: i32) -> (i32, i32, i32) {
    %c0_i32 = arith.constant 0 : i32
    %c0_i32_0 = arith.constant 0 : i32
    %c0_i32_1 = arith.constant 0 : i32
    return %arg0, %c0_i32, %c0_i32_0 : i32, i32, i32
  }
  func.func @transform_4(%arg0: i32) -> (i32, i32, i32) {
    %c0_i32 = arith.constant 0 : i32
    %c0_i32_0 = arith.constant 0 : i32
    %c0_i32_1 = arith.constant 0 : i32
    return %arg0, %c0_i32, %c0_i32_0 : i32, i32, i32
  }
  func.func @transform_5(%arg0: i32) -> (i32, i32, i32) {
    %c0_i32 = arith.constant 0 : i32
    %c0_i32_0 = arith.constant 0 : i32
    %c0_i32_1 = arith.constant 0 : i32
    return %arg0, %c0_i32, %c0_i32_0 : i32, i32, i32
  }
}

module attributes {stable_mosaic.version = 11 : i64} {
  func.func @_sep_dec_kernel(%arg0: i32, %arg1: memref<1x32x1024xbf16, #tpu.memory_space<vmem>>, %arg2: memref<1x32x32xbf16, #tpu.memory_space<vmem>>, %arg3: memref<1x32x1xf32, #tpu.memory_space<vmem>>, %arg4: memref<1x32x16xbf16, #tpu.memory_space<vmem>>, %arg5: memref<16x1024xbf16, #tpu.memory_space<vmem>>, %arg6: memref<16x32xbf16, #tpu.memory_space<vmem>>, %arg7: memref<1x8x1024xf32, #tpu.memory_space<vmem>>, %arg8: memref<1x8x1xf32, #tpu.memory_space<vmem>>) attributes {dimension_semantics = [#tpu.dimension_semantics<parallel>], iteration_bounds = array<i64: 2>, scalar_prefetch = 0 : i64, scratch_operands = 0 : i64, tpu.core_type = #tpu.core_type<tc>, window_params = [{transform_indices = @transform_0, window_bounds = array<i64: 1, 32, 1024>}, {transform_indices = @transform_1, window_bounds = array<i64: 1, 32, 32>}, {transform_indices = @transform_2, window_bounds = array<i64: 1, 32, 1>}, {transform_indices = @transform_3, window_bounds = array<i64: 1, 32, 16>}, {pipeline_mode = #tpu.pipeline_mode<synchronous>, transform_indices = @transform_4, window_bounds = array<i64: 16, 1024>}, {pipeline_mode = #tpu.pipeline_mode<synchronous>, transform_indices = @transform_5, window_bounds = array<i64: 16, 32>}, {transform_indices = @transform_6, window_bounds = array<i64: 1, 8, 1024>}, {transform_indices = @transform_7, window_bounds = array<i64: 1, 8, 1>}]} {
    %c0 = arith.constant 0 : index
    %c0_0 = arith.constant 0 : index
    %c0_1 = arith.constant 0 : index
    %0 = vector.load %arg1[%c0, %c0_0, %c0_1] : memref<1x32x1024xbf16, #tpu.memory_space<vmem>>, vector<1x32x1024xbf16>
    %1 = vector.shape_cast %0 : vector<1x32x1024xbf16> to vector<32x1024xbf16>
    %c0_2 = arith.constant 0 : index
    %c0_3 = arith.constant 0 : index
    %c0_4 = arith.constant 0 : index
    %2 = vector.load %arg2[%c0_2, %c0_3, %c0_4] : memref<1x32x32xbf16, #tpu.memory_space<vmem>>, vector<1x32x32xbf16>
    %3 = vector.shape_cast %2 : vector<1x32x32xbf16> to vector<32x32xbf16>
    %cst = arith.constant dense<0.000000e+00> : vector<32x1024xf32>
    %4 = tpu.matmul %3, %1, %cst {dimension_numbers = #tpu.dot_dimension_numbers<[1], [0], [0], [1], [0, 0, 1, 1], [], []>} : vector<32x32xbf16>, vector<32x1024xbf16>, vector<32x1024xf32> -> vector<32x1024xf32>
    %c0_5 = arith.constant 0 : index
    %c0_6 = arith.constant 0 : index
    %c0_7 = arith.constant 0 : index
    %5 = vector.load %arg4[%c0_5, %c0_6, %c0_7] : memref<1x32x16xbf16, #tpu.memory_space<vmem>>, vector<1x32x16xbf16>
    %6 = vector.shape_cast %5 : vector<1x32x16xbf16> to vector<32x16xbf16>
    %c0_8 = arith.constant 0 : index
    %c0_9 = arith.constant 0 : index
    %7 = vector.load %arg5[%c0_8, %c0_9] : memref<16x1024xbf16, #tpu.memory_space<vmem>>, vector<16x1024xbf16>
    %cst_10 = arith.constant dense<0.000000e+00> : vector<32x1024xf32>
    %8 = tpu.matmul %6, %7, %cst_10 {dimension_numbers = #tpu.dot_dimension_numbers<[1], [0], [0], [1], [0, 0, 1, 1], [], []>} : vector<32x16xbf16>, vector<16x1024xbf16>, vector<32x1024xf32> -> vector<32x1024xf32>
    %9 = arith.addf %4, %8 : vector<32x1024xf32>
    %c0_11 = arith.constant 0 : index
    %c0_12 = arith.constant 0 : index
    %c0_13 = arith.constant 0 : index
    %10 = vector.load %arg3[%c0_11, %c0_12, %c0_13] : memref<1x32x1xf32, #tpu.memory_space<vmem>>, vector<1x32x1xf32>
    %11 = vector.shape_cast %10 : vector<1x32x1xf32> to vector<32x1xf32>
    %12 = vector.broadcast %11 : vector<32x1xf32> to vector<32x1024xf32>
    %13 = arith.addf %9, %12 : vector<32x1024xf32>
    %cst_14 = arith.constant 0.000000e+00 : f32
    %14 = vector.broadcast %cst_14 : f32 to vector<32x1024xf32>
    %15 = arith.maximumf %13, %14 : vector<32x1024xf32>
    %16 = arith.extf %1 : vector<32x1024xbf16> to vector<32x1024xf32>
    %17 = arith.mulf %16, %15 : vector<32x1024xf32>
    %18 = arith.truncf %17 : vector<32x1024xf32> to vector<32x1024xbf16>
    %c0_15 = arith.constant 0 : index
    %c0_16 = arith.constant 0 : index
    %19 = vector.load %arg6[%c0_15, %c0_16] : memref<16x32xbf16, #tpu.memory_space<vmem>>, vector<16x32xbf16>
    %cst_17 = arith.constant dense<0.000000e+00> : vector<16x1024xf32>
    %20 = tpu.matmul %19, %18, %cst_17 {dimension_numbers = #tpu.dot_dimension_numbers<[1], [0], [0], [1], [0, 0, 1, 1], [], []>} : vector<16x32xbf16>, vector<32x1024xbf16>, vector<16x1024xf32> -> vector<16x1024xf32>
    %21 = vector.extract_strided_slice %20 {offsets = [0, 0], sizes = [8, 1024], strides = [1, 1]} : vector<16x1024xf32> to vector<8x1024xf32>
    %22 = vector.extract_strided_slice %20 {offsets = [8, 0], sizes = [8, 1024], strides = [1, 1]} : vector<16x1024xf32> to vector<8x1024xf32>
    %cst_18 = arith.constant 0.000000e+00 : f32
    %23 = vector.broadcast %cst_18 : f32 to vector<8x1xf32>
    %24 = vector.extract_strided_slice %22 {offsets = [0, 0], sizes = [8, 1023], strides = [1, 1]} : vector<8x1024xf32> to vector<8x1023xf32>
    %25 = tpu.concatenate %23, %24 in 1 : vector<8x1xf32>, vector<8x1023xf32> -> vector<8x1024xf32>
    %26 = arith.addf %21, %25 : vector<8x1024xf32>
    %c0_19 = arith.constant 0 : index
    %c0_20 = arith.constant 0 : index
    %c0_21 = arith.constant 0 : index
    %27 = vector.load %arg7[%c0_19, %c0_20, %c0_21] : memref<1x8x1024xf32, #tpu.memory_space<vmem>>, vector<1x8x1024xf32>
    %28 = vector.shape_cast %27 : vector<1x8x1024xf32> to vector<8x1024xf32>
    %29 = vector.shape_cast %26 : vector<8x1024xf32> to vector<1x8x1024xf32>
    tpu.vector_store %arg7[%c0_19, %c0_20, %c0_21], %29 {strides = array<i32>} : memref<1x8x1024xf32, #tpu.memory_space<vmem>>, vector<1x8x1024xf32>,
    %30 = vector.extract_strided_slice %22 {offsets = [0, 1023], sizes = [8, 1], strides = [1, 1]} : vector<8x1024xf32> to vector<8x1xf32>
    %c0_22 = arith.constant 0 : index
    %c0_23 = arith.constant 0 : index
    %c0_24 = arith.constant 0 : index
    %31 = vector.load %arg8[%c0_22, %c0_23, %c0_24] : memref<1x8x1xf32, #tpu.memory_space<vmem>>, vector<1x8x1xf32>
    %32 = vector.shape_cast %31 : vector<1x8x1xf32> to vector<8x1xf32>
    %33 = vector.shape_cast %30 : vector<8x1xf32> to vector<1x8x1xf32>
    tpu.vector_store %arg8[%c0_22, %c0_23, %c0_24], %33 {strides = array<i32>} : memref<1x8x1xf32, #tpu.memory_space<vmem>>, vector<1x8x1xf32>,
    return
  }
  func.func @transform_0(%arg0: i32) -> (i32, i32, i32) {
    %c0_i32 = arith.constant 0 : i32
    %c0_i32_0 = arith.constant 0 : i32
    %c0_i32_1 = arith.constant 0 : i32
    return %arg0, %c0_i32, %c0_i32_0 : i32, i32, i32
  }
  func.func @transform_1(%arg0: i32) -> (i32, i32, i32) {
    %c0_i32 = arith.constant 0 : i32
    %c0_i32_0 = arith.constant 0 : i32
    %c0_i32_1 = arith.constant 0 : i32
    return %arg0, %c0_i32, %c0_i32_0 : i32, i32, i32
  }
  func.func @transform_2(%arg0: i32) -> (i32, i32, i32) {
    %c0_i32 = arith.constant 0 : i32
    %c0_i32_0 = arith.constant 0 : i32
    %c0_i32_1 = arith.constant 0 : i32
    return %arg0, %c0_i32, %c0_i32_0 : i32, i32, i32
  }
  func.func @transform_3(%arg0: i32) -> (i32, i32, i32) {
    %c0_i32 = arith.constant 0 : i32
    %c0_i32_0 = arith.constant 0 : i32
    %c0_i32_1 = arith.constant 0 : i32
    return %arg0, %c0_i32, %c0_i32_0 : i32, i32, i32
  }
  func.func @transform_4(%arg0: i32) -> (i32, i32) {
    %c0_i32 = arith.constant 0 : i32
    %c0_i32_0 = arith.constant 0 : i32
    %c0_i32_1 = arith.constant 0 : i32
    return %c0_i32, %c0_i32_0 : i32, i32
  }
  func.func @transform_5(%arg0: i32) -> (i32, i32) {
    %c0_i32 = arith.constant 0 : i32
    %c0_i32_0 = arith.constant 0 : i32
    %c0_i32_1 = arith.constant 0 : i32
    return %c0_i32, %c0_i32_0 : i32, i32
  }
  func.func @transform_6(%arg0: i32) -> (i32, i32, i32) {
    %c0_i32 = arith.constant 0 : i32
    %c0_i32_0 = arith.constant 0 : i32
    %c0_i32_1 = arith.constant 0 : i32
    return %arg0, %c0_i32, %c0_i32_0 : i32, i32, i32
  }
  func.func @transform_7(%arg0: i32) -> (i32, i32, i32) {
    %c0_i32 = arith.constant 0 : i32
    %c0_i32_0 = arith.constant 0 : i32
    %c0_i32_1 = arith.constant 0 : i32
    return %arg0, %c0_i32, %c0_i32_0 : i32, i32, i32
  }
}

</mosaic_0001>

<llo_original>
// kernel: mossformer_forward.2
$region0: #{mossformer_forward.2}
  #allocation0 [shape = 'u32[]', space=smem, size = 0x4, offset = 0x4, fixed_abs, tag = 'smem constant byte address 0x4 - core index']
  #allocation1 [shape = 'u32[144,128]{1,0:T(1,128)}', space=vmem, size = 0x12000, scoped, tag = 'internal scratch']
  %s0 = inlined_call_operand.vmem [shape: f32[2,8,1025], index: 0, kind: input, shape index: {}]
  %s1 = inlined_call_operand.vmem [shape: bf16[32,8], index: 1, kind: input, shape index: {}]
  %s2 = inlined_call_operand.vmem [shape: bf16[32,8], index: 2, kind: input, shape index: {}]
  %s3 = inlined_call_operand.vmem [shape: bf16[2,32,1024], index: 3, kind: output, shape index: {0}]
  %s4 = inlined_call_operand.vmem [shape: f32[2,8,128], index: 4, kind: output, shape index: {1}]
  %s5 = inlined_call_operand.vmem [shape: f32[2,8,128], index: 5, kind: output, shape index: {2}]
  %6 = xla_tuple %s3, %s4, %s5
  %s7 = sld [smem:[#allocation0]]
  $region61: #{mossformer_forward.2} parent=0
    _
  %s9 = ssub.s32 1, %s7
  %s10 = scalar_select 0, %s9, %s7
  loop: start=0, step=1, limit=4
  $region2: #{mossformer_forward.2} parent=0 // loop_pre_header
    _
  $region3: #{mossformer_forward.2} parent=0 // loop_header
    %s12 = sphi 0, %s16
    %p13 = scmp.ge.s32.totalorder %s12, 4
    %s22 = sphi 0, %s24
    %s25 = sphi 0, %s22
    %s26 = sphi 0, %s25
    %s42 = sphi 0, %s26
    %s46 = sphi 0, %s46
    %s48 = sphi 0, %s46
    %s49 = sphi 0, %s48
    %s63 = sphi 0, %s49
    %s67 = sphi 0, %s67
    %s69 = sphi 0, %s67
    %s70 = sphi 0, %s69
    %s84 = sphi 0, %s70
    %s90 = sphi 0, %s92
    %s93 = sphi 0, %s90
    %s94 = sphi 0, %s93
    %s110 = sphi 0, %s94
    %s116 = sphi 0, %s118
    %s119 = sphi 0, %s116
    %s120 = sphi 0, %s119
    %s136 = sphi 0, %s120
    %s142 = sphi 0, %s144
    %s145 = sphi 0, %s142
    %s146 = sphi 0, %s145
    %s162 = sphi 0, %s146
  $region4: #{mossformer_forward.2} parent=0 // loop_header_branch
    %15 = sbr.rel (%p13) target = $region8
  $region5: #{mossformer_forward.2} parent=0 // loop_body
    %s17 = ssub.s32 %s12, 1
    %s18 = ssub.s32 %s12, 2
    %s19 = sadd.s32 %s12, 1
    %s20 = ssub.s32 %s12, %s19
    %p21 = scmp.eq.s32.totalorder %s20, 0
    %s23 = sadd.s32 %s22, 1
    %s24 = scalar_select %p21, %s22, %s23
    %p27 = pneg %p21
    %p28 = scmp.eq.s32.totalorder %s12, 1
    %p29 = por %p27, %p28
    %p30 = scmp.ne.s32.totalorder %s22, %s25
    %p31 = scmp.eq.s32.totalorder %s12, 0
    %p32 = por %p30, %p31
    %p33 = scmp.ne.s32.totalorder %s22, %s25
    %p34 = scmp.eq.s32.totalorder %s17, 1
    %p35 = por %p33, %p34
    %p36 = scmp.ne.s32.totalorder %s25, %s26
    %p37 = scmp.eq.s32.totalorder %s17, 0
    %p38 = por %p36, %p37
    %p39 = scmp.ne.s32.totalorder %s25, %s26
    %p40 = scmp.eq.s32.totalorder %s18, 1
    %p41 = por %p39, %p40
    %p43 = scmp.ne.s32.totalorder %s26, %s42
    %p44 = scmp.eq.s32.totalorder %s18, 0
    %p45 = por %p43, %p44
    %s47 = sadd.s32 %s46, 1
    %p50 = scmp.eq.s32.totalorder %s12, 1
    %p51 = scmp.ne.s32.totalorder %s46, %s48
    %p52 = scmp.eq.s32.totalorder %s12, 0
    %p53 = por %p51, %p52
    %p54 = scmp.ne.s32.totalorder %s46, %s48
    %p55 = scmp.eq.s32.totalorder %s17, 1
    %p56 = por %p54, %p55
    %p57 = scmp.ne.s32.totalorder %s48, %s49
    %p58 = scmp.eq.s32.totalorder %s17, 0
    %p59 = por %p57, %p58
    %p60 = scmp.ne.s32.totalorder %s48, %s49
    %p61 = scmp.eq.s32.totalorder %s18, 1
    %p62 = por %p60, %p61
    %p64 = scmp.ne.s32.totalorder %s49, %s63
    %p65 = scmp.eq.s32.totalorder %s18, 0
    %p66 = por %p64, %p65
    %s68 = sadd.s32 %s67, 1
    %p71 = scmp.eq.s32.totalorder %s12, 1
    %p72 = scmp.ne.s32.totalorder %s67, %s69
    %p73 = scmp.eq.s32.totalorder %s12, 0
    %p74 = por %p72, %p73
    %p75 = scmp.ne.s32.totalorder %s67, %s69
    %p76 = scmp.eq.s32.totalorder %s17, 1
    %p77 = por %p75, %p76
    %p78 = scmp.ne.s32.totalorder %s69, %s70
    %p79 = scmp.eq.s32.totalorder %s17, 0
    %p80 = por %p78, %p79
    %p81 = scmp.ne.s32.totalorder %s69, %s70
    %p82 = scmp.eq.s32.totalorder %s18, 1
    %p83 = por %p81, %p82
    %p85 = scmp.ne.s32.totalorder %s70, %s84
    %p86 = scmp.eq.s32.totalorder %s18, 0
    %p87 = por %p85, %p86
    %s88 = ssub.s32 %s12, %s19
    %p89 = scmp.eq.s32.totalorder %s88, 0
    %s91 = sadd.s32 %s90, 1
    %s92 = scalar_select %p89, %s90, %s91
    %p95 = pneg %p89
    %p96 = scmp.eq.s32.totalorder %s12, 1
    %p97 = por %p95, %p96
    %p98 = scmp.ne.s32.totalorder %s90, %s93
    %p99 = scmp.eq.s32.totalorder %s12, 0
    %p100 = por %p98, %p99
    %p101 = scmp.ne.s32.totalorder %s90, %s93
    %p102 = scmp.eq.s32.totalorder %s17, 1
    %p103 = por %p101, %p102
    %p104 = scmp.ne.s32.totalorder %s93, %s94
    %p105 = scmp.eq.s32.totalorder %s17, 0
    %p106 = por %p104, %p105
    %p107 = scmp.ne.s32.totalorder %s93, %s94
    %p108 = scmp.eq.s32.totalorder %s18, 1
    %p109 = por %p107, %p108
    %p111 = scmp.ne.s32.totalorder %s94, %s110
    %p112 = scmp.eq.s32.totalorder %s18, 0
    %p113 = por %p111, %p112
    %s114 = ssub.s32 %s12, %s19
    %p115 = scmp.eq.s32.totalorder %s114, 0
    %s117 = sadd.s32 %s116, 1
    %s118 = scalar_select %p115, %s116, %s117
    %p121 = pneg %p115
    %p122 = scmp.eq.s32.totalorder %s12, 1
    %p123 = por %p121, %p122
    %p124 = scmp.ne.s32.totalorder %s116, %s119
    %p125 = scmp.eq.s32.totalorder %s12, 0
    %p126 = por %p124, %p125
    %p127 = scmp.ne.s32.totalorder %s116, %s119
    %p128 = scmp.eq.s32.totalorder %s17, 1
    %p129 = por %p127, %p128
    %p130 = scmp.ne.s32.totalorder %s119, %s120
    %p131 = scmp.eq.s32.totalorder %s17, 0
    %p132 = por %p130, %p131
    %p133 = scmp.ne.s32.totalorder %s119, %s120
    %p134 = scmp.eq.s32.totalorder %s18, 1
    %p135 = por %p133, %p134
    %p137 = scmp.ne.s32.totalorder %s120, %s136
    %p138 = scmp.eq.s32.totalorder %s18, 0
    %p139 = por %p137, %p138
    %s140 = ssub.s32 %s12, %s19
    %p141 = scmp.eq.s32.totalorder %s140, 0
    %s143 = sadd.s32 %s142, 1
    %s144 = scalar_select %p141, %s142, %s143
    %p147 = pneg %p141
    %p148 = scmp.eq.s32.totalorder %s12, 1
    %p149 = por %p147, %p148
    %p150 = scmp.ne.s32.totalorder %s142, %s145
    %p151 = scmp.eq.s32.totalorder %s12, 0
    %p152 = por %p150, %p151
    %p153 = scmp.ne.s32.totalorder %s142, %s145
    %p154 = scmp.eq.s32.totalorder %s17, 1
    %p155 = por %p153, %p154
    %p156 = scmp.ne.s32.totalorder %s145, %s146
    %p157 = scmp.eq.s32.totalorder %s17, 0
    %p158 = por %p156, %p157
    %p159 = scmp.ne.s32.totalorder %s145, %s146
    %p160 = scmp.eq.s32.totalorder %s18, 1
    %p161 = por %p159, %p160
    %p163 = scmp.ne.s32.totalorder %s146, %s162
    %p164 = scmp.eq.s32.totalorder %s18, 0
    %p165 = por %p163, %p164
    %p166 = scmp.le.s32.totalorder 1, %s12
    %p167 = scmp.lt.s32.totalorder %s12, 3
    %p168 = pnand %p166, %p167
    %p169 = pneg %p168
    // Predicated region
    $region9: #{mossformer_forward.2} parent=5 // pred_check
      _
    $region10: #{mossformer_forward.2} parent=5 // pred_check_branch
      %171 = sbr.rel (%p168) target = $region12
    $region11: #{mossformer_forward.2} parent=5 // pred_region
      %s172 = ssub.s32 %s12, 1
      // Predicated region
      $region13: #{mossformer_forward.2} parent=11 // pred_check
        %p173 = pneg %p59
      $region14: #{mossformer_forward.2} parent=11 // pred_check_branch
        %175 = sbr.rel (%p173) target = $region16
      $region15: #{mossformer_forward.2} parent=11 // pred_region
        _
      $region16: #{mossformer_forward.2} parent=11 // pred_fallthru
        _
      // Predicated region
      $region17: #{mossformer_forward.2} parent=11 // pred_check
        %p176 = pneg %p80
      $region18: #{mossformer_forward.2} parent=11 // pred_check_branch
        %178 = sbr.rel (%p176) target = $region20
      $region19: #{mossformer_forward.2} parent=11 // pred_region
        _
      $region20: #{mossformer_forward.2} parent=11 // pred_fallthru
        _
    $region12: #{mossformer_forward.2} parent=5 // pred_fallthru
      _
    %p179 = scmp.lt.s32.totalorder %s12, 2
    // Predicated region
    $region21: #{mossformer_forward.2} parent=5 // pred_check
      %p180 = pneg %p179
    $region22: #{mossformer_forward.2} parent=5 // pred_check_branch
      %182 = sbr.rel (%p180) target = $region24
    $region23: #{mossformer_forward.2} parent=5 // pred_region
      // Predicated region
      $region25: #{mossformer_forward.2} parent=23 // pred_check
        %p183 = pneg %p32
      $region26: #{mossformer_forward.2} parent=23 // pred_check_branch
        %185 = sbr.rel (%p183) target = $region28
      $region27: #{mossformer_forward.2} parent=23 // pred_region
        %p186 = scmp.lt.s32.totalorder %s12, 1
        %s187 = scalar_select %p186, %s12, 1
        %s188 = smul.addr %s187, 9
        %s189 = smul.addr %s188, 8
        %s190 = scalar_lea.vmem %s0, %s189
      $region28: #{mossformer_forward.2} parent=23 // pred_fallthru
        _
    $region24: #{mossformer_forward.2} parent=5 // pred_fallthru
      _
    %p191 = scmp.le.s32.totalorder 1, %s12
    %p192 = scmp.lt.s32.totalorder %s12, 3
    %p193 = pnand %p191, %p192
    %p194 = pneg %p193
    // Predicated region
    $region29: #{mossformer_forward.2} parent=5 // pred_check
      _
    $region30: #{mossformer_forward.2} parent=5 // pred_check_branch
      %196 = sbr.rel (%p193) target = $region32
    $region31: #{mossformer_forward.2} parent=5 // pred_region
      %s197 = ssub.s32 %s12, 1
      %p198 = scmp.lt.s32.totalorder %s17, 1
      %s199 = scalar_select %p198, %s17, 1
      %s200 = smul.addr %s199, 9
      %s201 = smul.addr %s200, 8
      %s202 = scalar_lea.vmem %s0, %s201
      %p203 = pneg %p38
      %p204 = pneg %p35
      %p205 = pneg %p59
      %p206 = pneg %p56
      %p207 = pneg %p80
      %p208 = pneg %p77
      %p209 = pneg %p106
      %p210 = pneg %p103
      %p211 = scmp.lt.s32.totalorder %s17, 1
      %s212 = scalar_select %p211, %s17, 1
      %s213 = smul.addr %s212, 32
      %s214 = smul.addr %s213, 4
      %s215 = scalar_lea.vmem %s3, %s214
      %p216 = pneg %p132
      %p217 = pneg %p129
      %p218 = scmp.lt.s32.totalorder %s17, 1
      %s219 = scalar_select %p218, %s17, 1
      %s220 = smul.addr %s219, 8
      %s221 = scalar_lea.vmem %s4, %s220
      %p222 = pneg %p158
      %p223 = pneg %p155
      %p224 = scmp.lt.s32.totalorder %s17, 1
      %s225 = scalar_select %p224, %s17, 1
      %s226 = smul.addr %s225, 8
      %s227 = scalar_lea.vmem %s5, %s226
      %p228 = scmp.lt.s32.totalorder %s17, 1
      %s229 = scalar_select %p228, %s17, 1
      %s230 = smul.addr %s229, 9
      %s231 = smul.addr %s230, 8
      %s232 = scalar_lea.vmem %s0, %s231
      %p233 = scmp.lt.s32.totalorder %s17, 1
      %s234 = scalar_select %p233, %s17, 1
      %s235 = smul.addr %s234, 32
      %s236 = smul.addr %s235, 4
      %s237 = scalar_lea.vmem %s3, %s236
      %p238 = scmp.lt.s32.totalorder %s17, 1
      %s239 = scalar_select %p238, %s17, 1
      %s240 = smul.addr %s239, 8
      %s241 = scalar_lea.vmem %s4, %s240
      %p242 = scmp.lt.s32.totalorder %s17, 1
      %s243 = scalar_select %p242, %s17, 1
      %s244 = smul.addr %s243, 8
      %s245 = scalar_lea.vmem %s5, %s244
      %v247 = vld [vmem:[%s232] sm:$0xff]
      %v248 = vld [vmem:[%s232 + $0x8] sm:$0xff]
      %v249 = vld [vmem:[%s232 + $0x10] sm:$0xff]
      %v250 = vld [vmem:[%s232 + $0x18] sm:$0xff]
      %v251 = vld [vmem:[%s232 + $0x20] sm:$0xff]
      %v252 = vld [vmem:[%s232 + $0x28] sm:$0xff]
      %v253 = vld [vmem:[%s232 + $0x30] sm:$0xff]
      %v254 = vld [vmem:[%s232 + $0x38] sm:$0xff]
      %v255 = vld [vmem:[%s232 + $0x40] sm:$0xff]
      %v256 = vpack.c.bf16 %v247, %v247
      %v257 = vpack.c.bf16 %v248, %v248
      %v258 = vpack.c.bf16 %v249, %v249
      %v259 = vpack.c.bf16 %v250, %v250
      %v260 = vpack.c.bf16 %v251, %v251
      %v261 = vpack.c.bf16 %v252, %v252
      %v262 = vpack.c.bf16 %v253, %v253
      %v263 = vpack.c.bf16 %v254, %v254
      %v264 = vpack.c.bf16 %v255, %v255
      %v265 = vld [vmem:[%s1] sm:$0xf]
      %v266 = vld [vmem:[%s1 + $0x4] sm:$0xf]
      %v267 = vld [vmem:[%s1 + $0x8] sm:$0xf]
      %v268 = vld [vmem:[%s1 + $0xc] sm:$0xf]
      %v269 = vld [vmem:[%s2] sm:$0xf]
      %v270 = vld [vmem:[%s2 + $0x4] sm:$0xf]
      %v271 = vld [vmem:[%s2 + $0x8] sm:$0xf]
      %v272 = vld [vmem:[%s2 + $0xc] sm:$0xf]
      %v277 = vunpack.c.l.b16 %v269
      %v278 = vunpack.c.l.b16 %v270
      %v279 = vunpack.c.l.b16 %v271
      %v280 = vunpack.c.l.b16 %v272
      %v281 = vpack.c.b16 %v278, %v277
      %v282 = vpack.c.b16 %v280, %v279
      %292 = vrot.lane.b32.xlu0 %v256, 127
      %v293 = vpop.permute.xlu0 %292
      %294 = vrot.lane.b32.xlu0 %v257, 127
      %v295 = vpop.permute.xlu0 %294
      %296 = vrot.lane.b32.xlu0 %v258, 127
      %v297 = vpop.permute.xlu0 %296
      %298 = vrot.lane.b32.xlu0 %v259, 127
      %v299 = vpop.permute.xlu0 %298
      %300 = vrot.lane.b32.xlu0 %v260, 127
      %v301 = vpop.permute.xlu0 %300
      %302 = vrot.lane.b32.xlu0 %v261, 127
      %v303 = vpop.permute.xlu0 %302
      %304 = vrot.lane.b32.xlu0 %v262, 127
      %v305 = vpop.permute.xlu0 %304
      %306 = vrot.lane.b32.xlu0 %v263, 127
      %v307 = vpop.permute.xlu0 %306
      %308 = vrot.lane.b32.xlu0 %v264, 127
      %v309 = vpop.permute.xlu0 %308
      %vm310 = vcmask 1039360
      %v311 = vsel %vm310, %v293, %v295
      %v312 = vsel %vm310, %v295, %v297
      %v313 = vsel %vm310, %v297, %v299
      %v314 = vsel %vm310, %v299, %v301
      %v315 = vsel %vm310, %v301, %v303
      %v316 = vsel %vm310, %v303, %v305
      %v317 = vsel %vm310, %v305, %v307
      %v318 = vsel %vm310, %v307, %v309
      %vm319 = vcmask 64512
      %v321 = vsel %vm319, %v281, 0
      %v324 = vsel %vm319, %v282, 0
      %vm326 = vcmask 1043456
      %v328 = vsel %vm326, %v311, 0
      %v331 = vsel %vm326, %v312, 0
      %v334 = vsel %vm326, %v313, 0
      %v337 = vsel %vm326, %v314, 0
      %v340 = vsel %vm326, %v315, 0
      %v343 = vsel %vm326, %v316, 0
      %v346 = vsel %vm326, %v317, 0
      %v349 = vsel %vm326, %v318, 0
      %351 = vmatprep.subr.bf16.mxu0 %v331
      %352 = vmatpush1.bf16.msra.mxu0 %v328
      %353 = vmatprep.subr.bf16.mxu0 0
      %354 = vmatpush1.bf16.msra.mxu0 0
      %355 = vmatprep.subr.bf16.mxu0 0
      %356 = vmatpush1.bf16.msra.mxu0 0
      %357 = vmatprep.subr.bf16.mxu0 0
      %358 = vmatpush1.bf16.msra.mxu0 0
      %359 = vmatprep.subr.bf16.mxu0 0
      %360 = vmatpush1.bf16.msra.mxu0 0
      %361 = vmatprep.subr.bf16.mxu0 0
      %362 = vmatpush1.bf16.msra.mxu0 0
      %363 = vmatprep.subr.bf16.mxu0 0
      %364 = vmatpush1.bf16.msra.mxu0 0
      %365 = vmatprep.subr.bf16.mxu0 0
      %366 = vmatpush1.bf16.msra.mxu0 0
      %367 = vmatprep.subr.bf16.mxu0 0
      %368 = vmatpush1.bf16.msra.mxu0 0
      %369 = vmatprep.subr.bf16.mxu0 0
      %370 = vmatpush1.bf16.msra.mxu0 0
      %371 = vmatprep.subr.bf16.mxu0 0
      %372 = vmatpush1.bf16.msra.mxu0 0
      %373 = vmatprep.subr.bf16.mxu0 0
      %374 = vmatpush1.bf16.msra.mxu0 0
      %375 = vmatprep.subr.bf16.mxu0 0
      %376 = vmatpush1.bf16.msra.mxu0 0
      %377 = vmatprep.subr.bf16.mxu0 0
      %378 = vmatpush1.bf16.msra.mxu0 0
      %379 = vmatprep.subr.bf16.mxu0 0
      %380 = vmatpush1.bf16.msra.mxu0 0
      %381 = vmatprep.subr.bf16.mxu0 0
      %382 = vmatpush1.bf16.msra.mxu0 0
      %383 = vmatprep.mubr.bf16.mxu0 0
      %384 = vmatmul.mubr.bf16.gmra.mrb[0].mxu0 %v321
      %v385 = vpop.f32.mrb[0].mxu0
      %v386 = vadd.f32 0.0, %v385
      %v387 = vpop.f32.mrb[0].mxu0
      %v388 = vadd.f32 0.0, %v387
      %v389 = vpop.f32.mrb[0].mxu0
      %v390 = vadd.f32 0.0, %v389
      %v391 = vpop.f32.mrb[0].mxu0
      %v392 = vadd.f32 0.0, %v391
      %393 = vmatprep.mubr.bf16.mxu0 0
      %394 = vmatmul.mubr.bf16.gmra.mrb[0].mxu0 %v324
      %v395 = vpop.f32.mrb[0].mxu0
      %v396 = vadd.f32 0.0, %v395
      %v397 = vpop.f32.mrb[0].mxu0
      %v398 = vadd.f32 0.0, %v397
      %v399 = vpop.f32.mrb[0].mxu0
      %v400 = vadd.f32 0.0, %v399
      %v401 = vpop.f32.mrb[0].mxu0
      %v402 = vadd.f32 0.0, %v401
      %403 = vdwg.mxu0
      %404 = vmatprep.subr.bf16.mxu0 %v337
      %405 = vmatpush1.bf16.msra.mxu0 %v334
      %406 = vmatprep.subr.bf16.mxu0 0
      %407 = vmatpush1.bf16.msra.mxu0 0
      %408 = vmatprep.subr.bf16.mxu0 0
      %409 = vmatpush1.bf16.msra.mxu0 0
      %410 = vmatprep.subr.bf16.mxu0 0
      %411 = vmatpush1.bf16.msra.mxu0 0
      %412 = vmatprep.subr.bf16.mxu0 0
      %413 = vmatpush1.bf16.msra.mxu0 0
      %414 = vmatprep.subr.bf16.mxu0 0
      %415 = vmatpush1.bf16.msra.mxu0 0
      %416 = vmatprep.subr.bf16.mxu0 0
      %417 = vmatpush1.bf16.msra.mxu0 0
      %418 = vmatprep.subr.bf16.mxu0 0
      %419 = vmatpush1.bf16.msra.mxu0 0
      %420 = vmatprep.subr.bf16.mxu0 0
      %421 = vmatpush1.bf16.msra.mxu0 0
      %422 = vmatprep.subr.bf16.mxu0 0
      %423 = vmatpush1.bf16.msra.mxu0 0
      %424 = vmatprep.subr.bf16.mxu0 0
      %425 = vmatpush1.bf16.msra.mxu0 0
      %426 = vmatprep.subr.bf16.mxu0 0
      %427 = vmatpush1.bf16.msra.mxu0 0
      %428 = vmatprep.subr.bf16.mxu0 0
      %429 = vmatpush1.bf16.msra.mxu0 0
      %430 = vmatprep.subr.bf16.mxu0 0
      %431 = vmatpush1.bf16.msra.mxu0 0
      %432 = vmatprep.subr.bf16.mxu0 0
      %433 = vmatpush1.bf16.msra.mxu0 0
      %434 = vmatprep.subr.bf16.mxu0 0
      %435 = vmatpush1.bf16.msra.mxu0 0
      %436 = vmatprep.mubr.bf16.mxu0 0
      %437 = vmatmul.mubr.bf16.gmra.mrb[0].mxu0 %v321
      %v438 = vpop.f32.mrb[0].mxu0
      %v439 = vadd.f32 0.0, %v438
      %v440 = vpop.f32.mrb[0].mxu0
      %v441 = vadd.f32 0.0, %v440
      %v442 = vpop.f32.mrb[0].mxu0
      %v443 = vadd.f32 0.0, %v442
      %v444 = vpop.f32.mrb[0].mxu0
      %v445 = vadd.f32 0.0, %v444
      %446 = vmatprep.mubr.bf16.mxu0 0
      %447 = vmatmul.mubr.bf16.gmra.mrb[0].mxu0 %v324
      %v448 = vpop.f32.mrb[0].mxu0
      %v449 = vadd.f32 0.0, %v448
      %v450 = vpop.f32.mrb[0].mxu0
      %v451 = vadd.f32 0.0, %v450
      %v452 = vpop.f32.mrb[0].mxu0
      %v453 = vadd.f32 0.0, %v452
      %v454 = vpop.f32.mrb[0].mxu0
      %v455 = vadd.f32 0.0, %v454
      %456 = vdwg.mxu0
      %457 = vmatprep.subr.bf16.mxu0 %v343
      %458 = vmatpush1.bf16.msra.mxu0 %v340
      %459 = vmatprep.subr.bf16.mxu0 0
      %460 = vmatpush1.bf16.msra.mxu0 0
      %461 = vmatprep.subr.bf16.mxu0 0
      %462 = vmatpush1.bf16.msra.mxu0 0
      %463 = vmatprep.subr.bf16.mxu0 0
      %464 = vmatpush1.bf16.msra.mxu0 0
      %465 = vmatprep.subr.bf16.mxu0 0
      %466 = vmatpush1.bf16.msra.mxu0 0
      %467 = vmatprep.subr.bf16.mxu0 0
      %468 = vmatpush1.bf16.msra.mxu0 0
      %469 = vmatprep.subr.bf16.mxu0 0
      %470 = vmatpush1.bf16.msra.mxu0 0
      %471 = vmatprep.subr.bf16.mxu0 0
      %472 = vmatpush1.bf16.msra.mxu0 0
      %473 = vmatprep.subr.bf16.mxu0 0
      %474 = vmatpush1.bf16.msra.mxu0 0
      %475 = vmatprep.subr.bf16.mxu0 0
      %476 = vmatpush1.bf16.msra.mxu0 0
      %477 = vmatprep.subr.bf16.mxu0 0
      %478 = vmatpush1.bf16.msra.mxu0 0
      %479 = vmatprep.subr.bf16.mxu0 0
      %480 = vmatpush1.bf16.msra.mxu0 0
      %481 = vmatprep.subr.bf16.mxu0 0
      %482 = vmatpush1.bf16.msra.mxu0 0
      %483 = vmatprep.subr.bf16.mxu0 0
      %484 = vmatpush1.bf16.msra.mxu0 0
      %485 = vmatprep.subr.bf16.mxu0 0
      %486 = vmatpush1.bf16.msra.mxu0 0
      %487 = vmatprep.subr.bf16.mxu0 0
      %488 = vmatpush1.bf16.msra.mxu0 0
      %489 = vmatprep.mubr.bf16.mxu0 0
      %490 = vmatmul.mubr.bf16.gmra.mrb[0].mxu0 %v321
      %v491 = vpop.f32.mrb[0].mxu0
      %v492 = vadd.f32 0.0, %v491
      %v493 = vpop.f32.mrb[0].mxu0
      %v494 = vadd.f32 0.0, %v493
      %v495 = vpop.f32.mrb[0].mxu0
      %v496 = vadd.f32 0.0, %v495
      %v497 = vpop.f32.mrb[0].mxu0
      %v498 = vadd.f32 0.0, %v497
      %499 = vmatprep.mubr.bf16.mxu0 0
      %500 = vmatmul.mubr.bf16.gmra.mrb[0].mxu0 %v324
      %v501 = vpop.f32.mrb[0].mxu0
      %v502 = vadd.f32 0.0, %v501
      %v503 = vpop.f32.mrb[0].mxu0
      %v504 = vadd.f32 0.0, %v503
      %v505 = vpop.f32.mrb[0].mxu0
      %v506 = vadd.f32 0.0, %v505
      %v507 = vpop.f32.mrb[0].mxu0
      %v508 = vadd.f32 0.0, %v507
      %509 = vdwg.mxu0
      %510 = vmatprep.subr.bf16.mxu0 %v349
      %511 = vmatpush1.bf16.msra.mxu0 %v346
      %512 = vmatprep.subr.bf16.mxu0 0
      %513 = vmatpush1.bf16.msra.mxu0 0
      %514 = vmatprep.subr.bf16.mxu0 0
      %515 = vmatpush1.bf16.msra.mxu0 0
      %516 = vmatprep.subr.bf16.mxu0 0
      %517 = vmatpush1.bf16.msra.mxu0 0
      %518 = vmatprep.subr.bf16.mxu0 0
      %519 = vmatpush1.bf16.msra.mxu0 0
      %520 = vmatprep.subr.bf16.mxu0 0
      %521 = vmatpush1.bf16.msra.mxu0 0
      %522 = vmatprep.subr.bf16.mxu0 0
      %523 = vmatpush1.bf16.msra.mxu0 0
      %524 = vmatprep.subr.bf16.mxu0 0
      %525 = vmatpush1.bf16.msra.mxu0 0
      %526 = vmatprep.subr.bf16.mxu0 0
      %527 = vmatpush1.bf16.msra.mxu0 0
      %528 = vmatprep.subr.bf16.mxu0 0
      %529 = vmatpush1.bf16.msra.mxu0 0
      %530 = vmatprep.subr.bf16.mxu0 0
      %531 = vmatpush1.bf16.msra.mxu0 0
      %532 = vmatprep.subr.bf16.mxu0 0
      %533 = vmatpush1.bf16.msra.mxu0 0
      %534 = vmatprep.subr.bf16.mxu0 0
      %535 = vmatpush1.bf16.msra.mxu0 0
      %536 = vmatprep.subr.bf16.mxu0 0
      %537 = vmatpush1.bf16.msra.mxu0 0
      %538 = vmatprep.subr.bf16.mxu0 0
      %539 = vmatpush1.bf16.msra.mxu0 0
      %540 = vmatprep.subr.bf16.mxu0 0
      %541 = vmatpush1.bf16.msra.mxu0 0
      %542 = vmatprep.mubr.bf16.mxu0 0
      %543 = vmatmul.mubr.bf16.gmra.mrb[0].mxu0 %v321
      %v544 = vpop.f32.mrb[0].mxu0
      %v545 = vadd.f32 0.0, %v544
      %v546 = vpop.f32.mrb[0].mxu0
      %v547 = vadd.f32 0.0, %v546
      %v548 = vpop.f32.mrb[0].mxu0
      %v549 = vadd.f32 0.0, %v548
      %v550 = vpop.f32.mrb[0].mxu0
      %v551 = vadd.f32 0.0, %v550
      %552 = vmatprep.mubr.bf16.mxu0 0
      %553 = vmatmul.mubr.bf16.gmra.mrb[0].mxu0 %v324
      %v554 = vpop.f32.mrb[0].mxu0
      %v555 = vadd.f32 0.0, %v554
      %v556 = vpop.f32.mrb[0].mxu0
      %v557 = vadd.f32 0.0, %v556
      %v558 = vpop.f32.mrb[0].mxu0
      %v559 = vadd.f32 0.0, %v558
      %v560 = vpop.f32.mrb[0].mxu0
      %v561 = vadd.f32 0.0, %v560
      %562 = vdwg.mxu0
      %v567 = vunpack.c.l.b16 %v265
      %v568 = vunpack.c.l.b16 %v266
      %v569 = vunpack.c.l.b16 %v267
      %v570 = vunpack.c.l.b16 %v268
      %v571 = vpack.c.b16 %v568, %v567
      %v572 = vpack.c.b16 %v570, %v569
      %v574 = vsel %vm319, %v571, 0
      %v577 = vsel %vm319, %v572, 0
      %v580 = vsel %vm326, %v256, 0
      %v583 = vsel %vm326, %v257, 0
      %v586 = vsel %vm326, %v258, 0
      %v589 = vsel %vm326, %v259, 0
      %v592 = vsel %vm326, %v260, 0
      %v595 = vsel %vm326, %v261, 0
      %v598 = vsel %vm326, %v262, 0
      %v601 = vsel %vm326, %v263, 0
      %603 = vmatprep.subr.bf16.mxu0 %v583
      %604 = vmatpush1.bf16.msra.mxu0 %v580
      %605 = vmatprep.subr.bf16.mxu0 0
      %606 = vmatpush1.bf16.msra.mxu0 0
      %607 = vmatprep.subr.bf16.mxu0 0
      %608 = vmatpush1.bf16.msra.mxu0 0
      %609 = vmatprep.subr.bf16.mxu0 0
      %610 = vmatpush1.bf16.msra.mxu0 0
      %611 = vmatprep.subr.bf16.mxu0 0
      %612 = vmatpush1.bf16.msra.mxu0 0
      %613 = vmatprep.subr.bf16.mxu0 0
      %614 = vmatpush1.bf16.msra.mxu0 0
      %615 = vmatprep.subr.bf16.mxu0 0
      %616 = vmatpush1.bf16.msra.mxu0 0
      %617 = vmatprep.subr.bf16.mxu0 0
      %618 = vmatpush1.bf16.msra.mxu0 0
      %619 = vmatprep.subr.bf16.mxu0 0
      %620 = vmatpush1.bf16.msra.mxu0 0
      %621 = vmatprep.subr.bf16.mxu0 0
      %622 = vmatpush1.bf16.msra.mxu0 0
      %623 = vmatprep.subr.bf16.mxu0 0
      %624 = vmatpush1.bf16.msra.mxu0 0
      %625 = vmatprep.subr.bf16.mxu0 0
      %626 = vmatpush1.bf16.msra.mxu0 0
      %627 = vmatprep.subr.bf16.mxu0 0
      %628 = vmatpush1.bf16.msra.mxu0 0
      %629 = vmatprep.subr.bf16.mxu0 0
      %630 = vmatpush1.bf16.msra.mxu0 0
      %631 = vmatprep.subr.bf16.mxu0 0
      %632 = vmatpush1.bf16.msra.mxu0 0
      %633 = vmatprep.subr.bf16.mxu0 0
      %634 = vmatpush1.bf16.msra.mxu0 0
      %635 = vmatprep.mubr.bf16.mxu0 0
      %636 = vmatmul.mubr.bf16.gmra.mrb[0].mxu0 %v574
      %v637 = vpop.f32.mrb[0].mxu0
      %v638 = vadd.f32 %v386, %v637
      %v639 = vpop.f32.mrb[0].mxu0
      %v640 = vadd.f32 %v388, %v639
      %v641 = vpop.f32.mrb[0].mxu0
      %v642 = vadd.f32 %v390, %v641
      %v643 = vpop.f32.mrb[0].mxu0
      %v644 = vadd.f32 %v392, %v643
      %645 = vmatprep.mubr.bf16.mxu0 0
      %646 = vmatmul.mubr.bf16.gmra.mrb[0].mxu0 %v577
      %v647 = vpop.f32.mrb[0].mxu0
      %v648 = vadd.f32 %v396, %v647
      %v649 = vpop.f32.mrb[0].mxu0
      %v650 = vadd.f32 %v398, %v649
      %v651 = vpop.f32.mrb[0].mxu0
      %v652 = vadd.f32 %v400, %v651
      %v653 = vpop.f32.mrb[0].mxu0
      %v654 = vadd.f32 %v402, %v653
      %655 = vdwg.mxu0
      %656 = vmatprep.subr.bf16.mxu0 %v589
      %657 = vmatpush1.bf16.msra.mxu0 %v586
      %658 = vmatprep.subr.bf16.mxu0 0
      %659 = vmatpush1.bf16.msra.mxu0 0
      %660 = vmatprep.subr.bf16.mxu0 0
      %661 = vmatpush1.bf16.msra.mxu0 0
      %662 = vmatprep.subr.bf16.mxu0 0
      %663 = vmatpush1.bf16.msra.mxu0 0
      %664 = vmatprep.subr.bf16.mxu0 0
      %665 = vmatpush1.bf16.msra.mxu0 0
      %666 = vmatprep.subr.bf16.mxu0 0
      %667 = vmatpush1.bf16.msra.mxu0 0
      %668 = vmatprep.subr.bf16.mxu0 0
      %669 = vmatpush1.bf16.msra.mxu0 0
      %670 = vmatprep.subr.bf16.mxu0 0
      %671 = vmatpush1.bf16.msra.mxu0 0
      %672 = vmatprep.subr.bf16.mxu0 0
      %673 = vmatpush1.bf16.msra.mxu0 0
      %674 = vmatprep.subr.bf16.mxu0 0
      %675 = vmatpush1.bf16.msra.mxu0 0
      %676 = vmatprep.subr.bf16.mxu0 0
      %677 = vmatpush1.bf16.msra.mxu0 0
      %678 = vmatprep.subr.bf16.mxu0 0
      %679 = vmatpush1.bf16.msra.mxu0 0
      %680 = vmatprep.subr.bf16.mxu0 0
      %681 = vmatpush1.bf16.msra.mxu0 0
      %682 = vmatprep.subr.bf16.mxu0 0
      %683 = vmatpush1.bf16.msra.mxu0 0
      %684 = vmatprep.subr.bf16.mxu0 0
      %685 = vmatpush1.bf16.msra.mxu0 0
      %686 = vmatprep.subr.bf16.mxu0 0
      %687 = vmatpush1.bf16.msra.mxu0 0
      %688 = vmatprep.mubr.bf16.mxu0 0
      %689 = vmatmul.mubr.bf16.gmra.mrb[0].mxu0 %v574
      %v690 = vpop.f32.mrb[0].mxu0
      %v691 = vadd.f32 %v439, %v690
      %v692 = vpop.f32.mrb[0].mxu0
      %v693 = vadd.f32 %v441, %v692
      %v694 = vpop.f32.mrb[0].mxu0
      %v695 = vadd.f32 %v443, %v694
      %v696 = vpop.f32.mrb[0].mxu0
      %v697 = vadd.f32 %v445, %v696
      %698 = vmatprep.mubr.bf16.mxu0 0
      %699 = vmatmul.mubr.bf16.gmra.mrb[0].mxu0 %v577
      %v700 = vpop.f32.mrb[0].mxu0
      %v701 = vadd.f32 %v449, %v700
      %v702 = vpop.f32.mrb[0].mxu0
      %v703 = vadd.f32 %v451, %v702
      %v704 = vpop.f32.mrb[0].mxu0
      %v705 = vadd.f32 %v453, %v704
      %v706 = vpop.f32.mrb[0].mxu0
      %v707 = vadd.f32 %v455, %v706
      %708 = vdwg.mxu0
      %709 = vmatprep.subr.bf16.mxu0 %v595
      %710 = vmatpush1.bf16.msra.mxu0 %v592
      %711 = vmatprep.subr.bf16.mxu0 0
      %712 = vmatpush1.bf16.msra.mxu0 0
      %713 = vmatprep.subr.bf16.mxu0 0
      %714 = vmatpush1.bf16.msra.mxu0 0
      %715 = vmatprep.subr.bf16.mxu0 0
      %716 = vmatpush1.bf16.msra.mxu0 0
      %717 = vmatprep.subr.bf16.mxu0 0
      %718 = vmatpush1.bf16.msra.mxu0 0
      %719 = vmatprep.subr.bf16.mxu0 0
      %720 = vmatpush1.bf16.msra.mxu0 0
      %721 = vmatprep.subr.bf16.mxu0 0
      %722 = vmatpush1.bf16.msra.mxu0 0
      %723 = vmatprep.subr.bf16.mxu0 0
      %724 = vmatpush1.bf16.msra.mxu0 0
      %725 = vmatprep.subr.bf16.mxu0 0
      %726 = vmatpush1.bf16.msra.mxu0 0
      %727 = vmatprep.subr.bf16.mxu0 0
      %728 = vmatpush1.bf16.msra.mxu0 0
      %729 = vmatprep.subr.bf16.mxu0 0
      %730 = vmatpush1.bf16.msra.mxu0 0
      %731 = vmatprep.subr.bf16.mxu0 0
      %732 = vmatpush1.bf16.msra.mxu0 0
      %733 = vmatprep.subr.bf16.mxu0 0
      %734 = vmatpush1.bf16.msra.mxu0 0
      %735 = vmatprep.subr.bf16.mxu0 0
      %736 = vmatpush1.bf16.msra.mxu0 0
      %737 = vmatprep.subr.bf16.mxu0 0
      %738 = vmatpush1.bf16.msra.mxu0 0
      %739 = vmatprep.subr.bf16.mxu0 0
      %740 = vmatpush1.bf16.msra.mxu0 0
      %741 = vmatprep.mubr.bf16.mxu0 0
      %742 = vmatmul.mubr.bf16.gmra.mrb[0].mxu0 %v574
      %v743 = vpop.f32.mrb[0].mxu0
      %v744 = vadd.f32 %v492, %v743
      %v745 = vpop.f32.mrb[0].mxu0
      %v746 = vadd.f32 %v494, %v745
      %v747 = vpop.f32.mrb[0].mxu0
      %v748 = vadd.f32 %v496, %v747
      %v749 = vpop.f32.mrb[0].mxu0
      %v750 = vadd.f32 %v498, %v749
      %751 = vmatprep.mubr.bf16.mxu0 0
      %752 = vmatmul.mubr.bf16.gmra.mrb[0].mxu0 %v577
      %v753 = vpop.f32.mrb[0].mxu0
      %v754 = vadd.f32 %v502, %v753
      %v755 = vpop.f32.mrb[0].mxu0
      %v756 = vadd.f32 %v504, %v755
      %v757 = vpop.f32.mrb[0].mxu0
      %v758 = vadd.f32 %v506, %v757
      %v759 = vpop.f32.mrb[0].mxu0
      %v760 = vadd.f32 %v508, %v759
      %761 = vdwg.mxu0
      %762 = vmatprep.subr.bf16.mxu0 %v601
      %763 = vmatpush1.bf16.msra.mxu0 %v598
      %764 = vmatprep.subr.bf16.mxu0 0
      %765 = vmatpush1.bf16.msra.mxu0 0
      %766 = vmatprep.subr.bf16.mxu0 0
      %767 = vmatpush1.bf16.msra.mxu0 0
      %768 = vmatprep.subr.bf16.mxu0 0
      %769 = vmatpush1.bf16.msra.mxu0 0
      %770 = vmatprep.subr.bf16.mxu0 0
      %771 = vmatpush1.bf16.msra.mxu0 0
      %772 = vmatprep.subr.bf16.mxu0 0
      %773 = vmatpush1.bf16.msra.mxu0 0
      %774 = vmatprep.subr.bf16.mxu0 0
      %775 = vmatpush1.bf16.msra.mxu0 0
      %776 = vmatprep.subr.bf16.mxu0 0
      %777 = vmatpush1.bf16.msra.mxu0 0
      %778 = vmatprep.subr.bf16.mxu0 0
      %779 = vmatpush1.bf16.msra.mxu0 0
      %780 = vmatprep.subr.bf16.mxu0 0
      %781 = vmatpush1.bf16.msra.mxu0 0
      %782 = vmatprep.subr.bf16.mxu0 0
      %783 = vmatpush1.bf16.msra.mxu0 0
      %784 = vmatprep.subr.bf16.mxu0 0
      %785 = vmatpush1.bf16.msra.mxu0 0
      %786 = vmatprep.subr.bf16.mxu0 0
      %787 = vmatpush1.bf16.msra.mxu0 0
      %788 = vmatprep.subr.bf16.mxu0 0
      %789 = vmatpush1.bf16.msra.mxu0 0
      %790 = vmatprep.subr.bf16.mxu0 0
      %791 = vmatpush1.bf16.msra.mxu0 0
      %792 = vmatprep.subr.bf16.mxu0 0
      %793 = vmatpush1.bf16.msra.mxu0 0
      %794 = vmatprep.mubr.bf16.mxu0 0
      %795 = vmatmul.mubr.bf16.gmra.mrb[0].mxu0 %v574
      %v796 = vpop.f32.mrb[0].mxu0
      %v797 = vadd.f32 %v545, %v796
      %v798 = vpop.f32.mrb[0].mxu0
      %v799 = vadd.f32 %v547, %v798
      %v800 = vpop.f32.mrb[0].mxu0
      %v801 = vadd.f32 %v549, %v800
      %v802 = vpop.f32.mrb[0].mxu0
      %v803 = vadd.f32 %v551, %v802
      %804 = vmatprep.mubr.bf16.mxu0 0
      %805 = vmatmul.mubr.bf16.gmra.mrb[0].mxu0 %v577
      %v806 = vpop.f32.mrb[0].mxu0
      %v807 = vadd.f32 %v555, %v806
      %v808 = vpop.f32.mrb[0].mxu0
      %v809 = vadd.f32 %v557, %v808
      %v810 = vpop.f32.mrb[0].mxu0
      %v811 = vadd.f32 %v559, %v810
      %v812 = vpop.f32.mrb[0].mxu0
      %v813 = vadd.f32 %v561, %v812
      %814 = vdwg.mxu0
      %v815 = vmax.f32 %v638, 0.0
      %v816 = vmax.f32 %v640, 0.0
      %v817 = vmax.f32 %v691, 0.0
      %v818 = vmax.f32 %v693, 0.0
      %v819 = vmax.f32 %v744, 0.0
      %v820 = vmax.f32 %v746, 0.0
      %v821 = vmax.f32 %v797, 0.0
      %v822 = vmax.f32 %v799, 0.0
      %v823 = vmax.f32 %v642, 0.0
      %v824 = vmax.f32 %v644, 0.0
      %v825 = vmax.f32 %v695, 0.0
      %v826 = vmax.f32 %v697, 0.0
      %v827 = vmax.f32 %v748, 0.0
      %v828 = vmax.f32 %v750, 0.0
      %v829 = vmax.f32 %v801, 0.0
      %v830 = vmax.f32 %v803, 0.0
      %v831 = vmax.f32 %v648, 0.0
      %v832 = vmax.f32 %v650, 0.0
      %v833 = vmax.f32 %v701, 0.0
      %v834 = vmax.f32 %v703, 0.0
      %v835 = vmax.f32 %v754, 0.0
      %v836 = vmax.f32 %v756, 0.0
      %v837 = vmax.f32 %v807, 0.0
      %v838 = vmax.f32 %v809, 0.0
      %v839 = vmax.f32 %v652, 0.0
      %v840 = vmax.f32 %v654, 0.0
      %v841 = vmax.f32 %v705, 0.0
      %v842 = vmax.f32 %v707, 0.0
      %v843 = vmax.f32 %v758, 0.0
      %v844 = vmax.f32 %v760, 0.0
      %v845 = vmax.f32 %v811, 0.0
      %v846 = vmax.f32 %v813, 0.0
      %v847 = vpack.c.bf16 %v823, %v815
      %v848 = vpack.c.bf16 %v824, %v816
      %v849 = vpack.c.bf16 %v825, %v817
      %v850 = vpack.c.bf16 %v826, %v818
      %v851 = vpack.c.bf16 %v827, %v819
      %v852 = vpack.c.bf16 %v828, %v820
      %v853 = vpack.c.bf16 %v829, %v821
      %v854 = vpack.c.bf16 %v830, %v822
      %v855 = vpack.c.bf16 %v839, %v831
      %v856 = vpack.c.bf16 %v840, %v832
      %v857 = vpack.c.bf16 %v841, %v833
      %v858 = vpack.c.bf16 %v842, %v834
      %v859 = vpack.c.bf16 %v843, %v835
      %v860 = vpack.c.bf16 %v844, %v836
      %v861 = vpack.c.bf16 %v845, %v837
      %v862 = vpack.c.bf16 %v846, %v838
      %v879 = vunpack.c.l.b16 %v847
      %v880 = vunpack.c.l.b16 %v848
      %v881 = vunpack.c.l.b16 %v849
      %v882 = vunpack.c.l.b16 %v850
      %v883 = vunpack.c.l.b16 %v851
      %v884 = vunpack.c.l.b16 %v852
      %v885 = vunpack.c.l.b16 %v853
      %v886 = vunpack.c.l.b16 %v854
      %v887 = vunpack.c.h.b16 %v847
      %v888 = vunpack.c.h.b16 %v848
      %v889 = vunpack.c.h.b16 %v849
      %v890 = vunpack.c.h.b16 %v850
      %v891 = vunpack.c.h.b16 %v851
      %v892 = vunpack.c.h.b16 %v852
      %v893 = vunpack.c.h.b16 %v853
      %v894 = vunpack.c.h.b16 %v854
      %v895 = vunpack.c.l.b16 %v855
      %v896 = vunpack.c.l.b16 %v856
      %v897 = vunpack.c.l.b16 %v857
      %v898 = vunpack.c.l.b16 %v858
      %v899 = vunpack.c.l.b16 %v859
      %v900 = vunpack.c.l.b16 %v860
      %v901 = vunpack.c.l.b16 %v861
      %v902 = vunpack.c.l.b16 %v862
      %v903 = vunpack.c.h.b16 %v855
      %v904 = vunpack.c.h.b16 %v856
      %v905 = vunpack.c.h.b16 %v857
      %v906 = vunpack.c.h.b16 %v858
      %v907 = vunpack.c.h.b16 %v859
      %v908 = vunpack.c.h.b16 %v860
      %v909 = vunpack.c.h.b16 %v861
      %v910 = vunpack.c.h.b16 %v862
      %v911 = vpack.c.b16 %v880, %v879
      %v912 = vpack.c.b16 %v882, %v881
      %v913 = vpack.c.b16 %v884, %v883
      %v914 = vpack.c.b16 %v886, %v885
      %v915 = vpack.c.b16 %v888, %v887
      %v916 = vpack.c.b16 %v890, %v889
      %v917 = vpack.c.b16 %v892, %v891
      %v918 = vpack.c.b16 %v894, %v893
      %v919 = vpack.c.b16 %v896, %v895
      %v920 = vpack.c.b16 %v898, %v897
      %v921 = vpack.c.b16 %v900, %v899
      %v922 = vpack.c.b16 %v902, %v901
      %v923 = vpack.c.b16 %v904, %v903
      %v924 = vpack.c.b16 %v906, %v905
      %v925 = vpack.c.b16 %v908, %v907
      %v926 = vpack.c.b16 %v910, %v909
      %943 = vst [vmem:[%s237] sm:$0xff] %v911
      %944 = vst [vmem:[%s237 + $0x8] sm:$0xff] %v912
      %945 = vst [vmem:[%s237 + $0x10] sm:$0xff] %v913
      %946 = vst [vmem:[%s237 + $0x18] sm:$0xff] %v914
      %947 = vst [vmem:[%s237 + $0x20] sm:$0xff] %v915
      %948 = vst [vmem:[%s237 + $0x28] sm:$0xff] %v916
      %949 = vst [vmem:[%s237 + $0x30] sm:$0xff] %v917
      %950 = vst [vmem:[%s237 + $0x38] sm:$0xff] %v918
      %951 = vst [vmem:[%s237 + $0x40] sm:$0xff] %v919
      %952 = vst [vmem:[%s237 + $0x48] sm:$0xff] %v920
      %953 = vst [vmem:[%s237 + $0x50] sm:$0xff] %v921
      %954 = vst [vmem:[%s237 + $0x58] sm:$0xff] %v922
      %955 = vst [vmem:[%s237 + $0x60] sm:$0xff] %v923
      %956 = vst [vmem:[%s237 + $0x68] sm:$0xff] %v924
      %957 = vst [vmem:[%s237 + $0x70] sm:$0xff] %v925
      %958 = vst [vmem:[%s237 + $0x78] sm:$0xff] %v926
      %v959 = vadd.f32 %v815, %v816
      %v960 = vadd.f32 %v959, %v817
      %v961 = vadd.f32 %v960, %v818
      %v962 = vadd.f32 %v961, %v819
      %v963 = vadd.f32 %v962, %v820
      %v964 = vadd.f32 %v963, %v821
      %v965 = vadd.f32 %v964, %v822
      %v966 = vadd.f32 %v965, %v823
      %v967 = vadd.f32 %v966, %v824
      %v968 = vadd.f32 %v967, %v825
      %v969 = vadd.f32 %v968, %v826
      %v970 = vadd.f32 %v969, %v827
      %v971 = vadd.f32 %v970, %v828
      %v972 = vadd.f32 %v971, %v829
      %v973 = vadd.f32 %v972, %v830
      %v974 = vadd.f32 %v973, %v831
      %v975 = vadd.f32 %v974, %v832
      %v976 = vadd.f32 %v975, %v833
      %v977 = vadd.f32 %v976, %v834
      %v978 = vadd.f32 %v977, %v835
      %v979 = vadd.f32 %v978, %v836
      %v980 = vadd.f32 %v979, %v837
      %v981 = vadd.f32 %v980, %v838
      %v982 = vadd.f32 %v981, %v839
      %v983 = vadd.f32 %v982, %v840
      %v984 = vadd.f32 %v983, %v841
      %v985 = vadd.f32 %v984, %v842
      %v986 = vadd.f32 %v985, %v843
      %v987 = vadd.f32 %v986, %v844
      %v988 = vadd.f32 %v987, %v845
      %v989 = vadd.f32 %v988, %v846
      %990 = vadd.xlane.f32.xlu0 %v989
      %v991 = vpop.xlane.xlu0 %990
      %v992 = vrot.slane %v991, 4
      %v993 = vadd.f32 %v991, %v992
      %v994 = vrot.slane %v993, 2
      %v995 = vadd.f32 %v993, %v994
      %v996 = vrot.slane %v995, 1
      %v997 = vadd.f32 %v995, %v996
      %s998 = vtos %v997
      %v999 = vstv %s998
      %v1000 = vadd.f32 %v999, 0.0
      %1001 = vst [vmem:[%s241] sm:$0xff] %v1000
      %v1002 = vmul.f32 %v815, %v815
      %v1003 = vmul.f32 %v816, %v816
      %v1004 = vmul.f32 %v817, %v817
      %v1005 = vmul.f32 %v818, %v818
      %v1006 = vmul.f32 %v819, %v819
      %v1007 = vmul.f32 %v820, %v820
      %v1008 = vmul.f32 %v821, %v821
      %v1009 = vmul.f32 %v822, %v822
      %v1010 = vmul.f32 %v823, %v823
      %v1011 = vmul.f32 %v824, %v824
      %v1012 = vmul.f32 %v825, %v825
      %v1013 = vmul.f32 %v826, %v826
      %v1014 = vmul.f32 %v827, %v827
      %v1015 = vmul.f32 %v828, %v828
      %v1016 = vmul.f32 %v829, %v829
      %v1017 = vmul.f32 %v830, %v830
      %v1018 = vmul.f32 %v831, %v831
      %v1019 = vmul.f32 %v832, %v832
      %v1020 = vmul.f32 %v833, %v833
      %v1021 = vmul.f32 %v834, %v834
      %v1022 = vmul.f32 %v835, %v835
      %v1023 = vmul.f32 %v836, %v836
      %v1024 = vmul.f32 %v837, %v837
      %v1025 = vmul.f32 %v838, %v838
      %v1026 = vmul.f32 %v839, %v839
      %v1027 = vmul.f32 %v840, %v840
      %v1028 = vmul.f32 %v841, %v841
      %v1029 = vmul.f32 %v842, %v842
      %v1030 = vmul.f32 %v843, %v843
      %v1031 = vmul.f32 %v844, %v844
      %v1032 = vmul.f32 %v845, %v845
      %v1033 = vmul.f32 %v846, %v846
      %v1034 = vadd.f32 %v1002, %v1003
      %v1035 = vadd.f32 %v1034, %v1004
      %v1036 = vadd.f32 %v1035, %v1005
      %v1037 = vadd.f32 %v1036, %v1006
      %v1038 = vadd.f32 %v1037, %v1007
      %v1039 = vadd.f32 %v1038, %v1008
      %v1040 = vadd.f32 %v1039, %v1009
      %v1041 = vadd.f32 %v1040, %v1010
      %v1042 = vadd.f32 %v1041, %v1011
      %v1043 = vadd.f32 %v1042, %v1012
      %v1044 = vadd.f32 %v1043, %v1013
      %v1045 = vadd.f32 %v1044, %v1014
      %v1046 = vadd.f32 %v1045, %v1015
      %v1047 = vadd.f32 %v1046, %v1016
      %v1048 = vadd.f32 %v1047, %v1017
      %v1049 = vadd.f32 %v1048, %v1018
      %v1050 = vadd.f32 %v1049, %v1019
      %v1051 = vadd.f32 %v1050, %v1020
      %v1052 = vadd.f32 %v1051, %v1021
      %v1053 = vadd.f32 %v1052, %v1022
      %v1054 = vadd.f32 %v1053, %v1023
      %v1055 = vadd.f32 %v1054, %v1024
      %v1056 = vadd.f32 %v1055, %v1025
      %v1057 = vadd.f32 %v1056, %v1026
      %v1058 = vadd.f32 %v1057, %v1027
      %v1059 = vadd.f32 %v1058, %v1028
      %v1060 = vadd.f32 %v1059, %v1029
      %v1061 = vadd.f32 %v1060, %v1030
      %v1062 = vadd.f32 %v1061, %v1031
      %v1063 = vadd.f32 %v1062, %v1032
      %v1064 = vadd.f32 %v1063, %v1033
      %1065 = vadd.xlane.f32.xlu0 %v1064
      %v1066 = vpop.xlane.xlu0 %1065
      %v1067 = vrot.slane %v1066, 4
      %v1068 = vadd.f32 %v1066, %v1067
      %v1069 = vrot.slane %v1068, 2
      %v1070 = vadd.f32 %v1068, %v1069
      %v1071 = vrot.slane %v1070, 1
      %v1072 = vadd.f32 %v1070, %v1071
      %s1073 = vtos %v1072
      %v1074 = vstv %s1073
      %v1075 = vadd.f32 %v1074, 0.0
      %1076 = vst [vmem:[%s245] sm:$0xff] %v1075
      %p1077 = scmp.lt.s32.totalorder %s17, 1
      %s1078 = scalar_select %p1077, %s17, 1
      %s1079 = smul.addr %s1078, 32
      %s1080 = smul.addr %s1079, 4
      %s1081 = scalar_lea.vmem %s3, %s1080
      %p1082 = scmp.lt.s32.totalorder %s17, 1
      %s1083 = scalar_select %p1082, %s17, 1
      %s1084 = smul.addr %s1083, 8
      %s1085 = scalar_lea.vmem %s4, %s1084
      %p1086 = scmp.lt.s32.totalorder %s17, 1
      %s1087 = scalar_select %p1086, %s17, 1
      %s1088 = smul.addr %s1087, 8
      %s1089 = scalar_lea.vmem %s5, %s1088
      // Predicated region
      $region33: #{mossformer_forward.2} parent=31 // pred_check
        %p1090 = pneg %p103
      $region34: #{mossformer_forward.2} parent=31 // pred_check_branch
        %1092 = sbr.rel (%p1090) target = $region36
      $region35: #{mossformer_forward.2} parent=31 // pred_region
        _
      $region36: #{mossformer_forward.2} parent=31 // pred_fallthru
        _
      // Predicated region
      $region37: #{mossformer_forward.2} parent=31 // pred_check
        %p1093 = pneg %p129
      $region38: #{mossformer_forward.2} parent=31 // pred_check_branch
        %1095 = sbr.rel (%p1093) target = $region40
      $region39: #{mossformer_forward.2} parent=31 // pred_region
        _
      $region40: #{mossformer_forward.2} parent=31 // pred_fallthru
        _
      // Predicated region
      $region41: #{mossformer_forward.2} parent=31 // pred_check
        %p1096 = pneg %p155
      $region42: #{mossformer_forward.2} parent=31 // pred_check_branch
        %1098 = sbr.rel (%p1096) target = $region44
      $region43: #{mossformer_forward.2} parent=31 // pred_region
        _
      $region44: #{mossformer_forward.2} parent=31 // pred_fallthru
        _
    $region32: #{mossformer_forward.2} parent=5 // pred_fallthru
      _
    %p1099 = scmp.le.s32.totalorder 2, %s12
    // Predicated region
    $region45: #{mossformer_forward.2} parent=5 // pred_check
      %p1100 = pneg %p1099
    $region46: #{mossformer_forward.2} parent=5 // pred_check_branch
      %1102 = sbr.rel (%p1100) target = $region48
    $region47: #{mossformer_forward.2} parent=5 // pred_region
      %s1103 = ssub.s32 %s12, 2
      // Predicated region
      $region49: #{mossformer_forward.2} parent=47 // pred_check
        %p1104 = pneg %p109
      $region50: #{mossformer_forward.2} parent=47 // pred_check_branch
        %1106 = sbr.rel (%p1104) target = $region52
      $region51: #{mossformer_forward.2} parent=47 // pred_region
        %p1107 = scmp.lt.s32.totalorder %s18, 1
        %s1108 = scalar_select %p1107, %s18, 1
        %s1109 = smul.addr %s1108, 32
        %s1110 = smul.addr %s1109, 4
        %s1111 = scalar_lea.vmem %s3, %s1110
      $region52: #{mossformer_forward.2} parent=47 // pred_fallthru
        _
      // Predicated region
      $region53: #{mossformer_forward.2} parent=47 // pred_check
        %p1112 = pneg %p135
      $region54: #{mossformer_forward.2} parent=47 // pred_check_branch
        %1114 = sbr.rel (%p1112) target = $region56
      $region55: #{mossformer_forward.2} parent=47 // pred_region
        %p1115 = scmp.lt.s32.totalorder %s18, 1
        %s1116 = scalar_select %p1115, %s18, 1
        %s1117 = smul.addr %s1116, 8
        %s1118 = scalar_lea.vmem %s4, %s1117
      $region56: #{mossformer_forward.2} parent=47 // pred_fallthru
        _
      // Predicated region
      $region57: #{mossformer_forward.2} parent=47 // pred_check
        %p1119 = pneg %p161
      $region58: #{mossformer_forward.2} parent=47 // pred_check_branch
        %1121 = sbr.rel (%p1119) target = $region60
      $region59: #{mossformer_forward.2} parent=47 // pred_region
        %p1122 = scmp.lt.s32.totalorder %s18, 1
        %s1123 = scalar_select %p1122, %s18, 1
        %s1124 = smul.addr %s1123, 8
        %s1125 = scalar_lea.vmem %s5, %s1124
      $region60: #{mossformer_forward.2} parent=47 // pred_fallthru
        _
    $region48: #{mossformer_forward.2} parent=5 // pred_fallthru
      _
  $region6: #{mossformer_forward.2} parent=0 // loop_footer
    %s16 = sadd.s32 1, %s12
  $region7: #{mossformer_forward.2} parent=0 // loop_footer_branch
    %11 = sbr.rel target = $region3
  $region8: #{mossformer_forward.2} parent=0 // loop_exit
    _

// kernel: mossformer_forward.3
$region0: #{mossformer_forward.3}
  #allocation0 [shape = 'u32[]', space=smem, size = 0x4, offset = 0x4, fixed_abs, tag = 'smem constant byte address 0x4 - core index']
  #allocation1 [shape = 'u32[144,128]{1,0:T(1,128)}', space=vmem, size = 0x12000, scoped, tag = 'internal scratch']
  %s0 = inlined_call_operand.vmem [shape: bf16[2,32,1024], index: 0, kind: input, shape index: {}]
  %s1 = inlined_call_operand.vmem [shape: bf16[2,32,32], index: 1, kind: input, shape index: {}]
  %s2 = inlined_call_operand.vmem [shape: f32[2,32,1], index: 2, kind: input, shape index: {}]
  %s3 = inlined_call_operand.vmem [shape: bf16[2,32,16], index: 3, kind: input, shape index: {}]
  %s4 = inlined_call_operand.vmem [shape: bf16[16,1024], index: 4, kind: input, shape index: {}]
  %s5 = inlined_call_operand.vmem [shape: bf16[16,32], index: 5, kind: input, shape index: {}]
  %s6 = inlined_call_operand.vmem [shape: f32[2,8,1024], index: 6, kind: output, shape index: {0}]
  %s7 = inlined_call_operand.vmem [shape: f32[2,8,1], index: 7, kind: output, shape index: {1}]
  %8 = xla_tuple %s6, %s7
  %s9 = sld [smem:[#allocation0]]
  $region65: #{mossformer_forward.3} parent=0
    _
  %s11 = ssub.s32 1, %s9
  %s12 = scalar_select 0, %s11, %s9
  loop: start=0, step=1, limit=4
  $region2: #{mossformer_forward.3} parent=0 // loop_pre_header
    _
  $region3: #{mossformer_forward.3} parent=0 // loop_header
    %s14 = sphi 0, %s18
    %p15 = scmp.ge.s32.totalorder %s14, 4
    %s24 = sphi 0, %s26
    %s27 = sphi 0, %s24
    %s28 = sphi 0, %s27
    %s44 = sphi 0, %s28
    %s50 = sphi 0, %s52
    %s53 = sphi 0, %s50
    %s54 = sphi 0, %s53
    %s70 = sphi 0, %s54
    %s76 = sphi 0, %s78
    %s79 = sphi 0, %s76
    %s80 = sphi 0, %s79
    %s96 = sphi 0, %s80
    %s102 = sphi 0, %s104
    %s105 = sphi 0, %s102
    %s106 = sphi 0, %s105
    %s122 = sphi 0, %s106
    %s126 = sphi 0, %s126
    %s128 = sphi 0, %s126
    %s129 = sphi 0, %s128
    %s143 = sphi 0, %s129
    %s147 = sphi 0, %s147
    %s149 = sphi 0, %s147
    %s150 = sphi 0, %s149
    %s164 = sphi 0, %s150
    %s170 = sphi 0, %s172
    %s173 = sphi 0, %s170
    %s174 = sphi 0, %s173
    %s190 = sphi 0, %s174
    %s196 = sphi 0, %s198
    %s199 = sphi 0, %s196
    %s200 = sphi 0, %s199
    %s216 = sphi 0, %s200
  $region4: #{mossformer_forward.3} parent=0 // loop_header_branch
    %17 = sbr.rel (%p15) target = $region8
  $region5: #{mossformer_forward.3} parent=0 // loop_body
    %s19 = ssub.s32 %s14, 1
    %s20 = ssub.s32 %s14, 2
    %s21 = sadd.s32 %s14, 1
    %s22 = ssub.s32 %s14, %s21
    %p23 = scmp.eq.s32.totalorder %s22, 0
    %s25 = sadd.s32 %s24, 1
    %s26 = scalar_select %p23, %s24, %s25
    %p29 = pneg %p23
    %p30 = scmp.eq.s32.totalorder %s14, 1
    %p31 = por %p29, %p30
    %p32 = scmp.ne.s32.totalorder %s24, %s27
    %p33 = scmp.eq.s32.totalorder %s14, 0
    %p34 = por %p32, %p33
    %p35 = scmp.ne.s32.totalorder %s24, %s27
    %p36 = scmp.eq.s32.totalorder %s19, 1
    %p37 = por %p35, %p36
    %p38 = scmp.ne.s32.totalorder %s27, %s28
    %p39 = scmp.eq.s32.totalorder %s19, 0
    %p40 = por %p38, %p39
    %p41 = scmp.ne.s32.totalorder %s27, %s28
    %p42 = scmp.eq.s32.totalorder %s20, 1
    %p43 = por %p41, %p42
    %p45 = scmp.ne.s32.totalorder %s28, %s44
    %p46 = scmp.eq.s32.totalorder %s20, 0
    %p47 = por %p45, %p46
    %s48 = ssub.s32 %s14, %s21
    %p49 = scmp.eq.s32.totalorder %s48, 0
    %s51 = sadd.s32 %s50, 1
    %s52 = scalar_select %p49, %s50, %s51
    %p55 = pneg %p49
    %p56 = scmp.eq.s32.totalorder %s14, 1
    %p57 = por %p55, %p56
    %p58 = scmp.ne.s32.totalorder %s50, %s53
    %p59 = scmp.eq.s32.totalorder %s14, 0
    %p60 = por %p58, %p59
    %p61 = scmp.ne.s32.totalorder %s50, %s53
    %p62 = scmp.eq.s32.totalorder %s19, 1
    %p63 = por %p61, %p62
    %p64 = scmp.ne.s32.totalorder %s53, %s54
    %p65 = scmp.eq.s32.totalorder %s19, 0
    %p66 = por %p64, %p65
    %p67 = scmp.ne.s32.totalorder %s53, %s54
    %p68 = scmp.eq.s32.totalorder %s20, 1
    %p69 = por %p67, %p68
    %p71 = scmp.ne.s32.totalorder %s54, %s70
    %p72 = scmp.eq.s32.totalorder %s20, 0
    %p73 = por %p71, %p72
    %s74 = ssub.s32 %s14, %s21
    %p75 = scmp.eq.s32.totalorder %s74, 0
    %s77 = sadd.s32 %s76, 1
    %s78 = scalar_select %p75, %s76, %s77
    %p81 = pneg %p75
    %p82 = scmp.eq.s32.totalorder %s14, 1
    %p83 = por %p81, %p82
    %p84 = scmp.ne.s32.totalorder %s76, %s79
    %p85 = scmp.eq.s32.totalorder %s14, 0
    %p86 = por %p84, %p85
    %p87 = scmp.ne.s32.totalorder %s76, %s79
    %p88 = scmp.eq.s32.totalorder %s19, 1
    %p89 = por %p87, %p88
    %p90 = scmp.ne.s32.totalorder %s79, %s80
    %p91 = scmp.eq.s32.totalorder %s19, 0
    %p92 = por %p90, %p91
    %p93 = scmp.ne.s32.totalorder %s79, %s80
    %p94 = scmp.eq.s32.totalorder %s20, 1
    %p95 = por %p93, %p94
    %p97 = scmp.ne.s32.totalorder %s80, %s96
    %p98 = scmp.eq.s32.totalorder %s20, 0
    %p99 = por %p97, %p98
    %s100 = ssub.s32 %s14, %s21
    %p101 = scmp.eq.s32.totalorder %s100, 0
    %s103 = sadd.s32 %s102, 1
    %s104 = scalar_select %p101, %s102, %s103
    %p107 = pneg %p101
    %p108 = scmp.eq.s32.totalorder %s14, 1
    %p109 = por %p107, %p108
    %p110 = scmp.ne.s32.totalorder %s102, %s105
    %p111 = scmp.eq.s32.totalorder %s14, 0
    %p112 = por %p110, %p111
    %p113 = scmp.ne.s32.totalorder %s102, %s105
    %p114 = scmp.eq.s32.totalorder %s19, 1
    %p115 = por %p113, %p114
    %p116 = scmp.ne.s32.totalorder %s105, %s106
    %p117 = scmp.eq.s32.totalorder %s19, 0
    %p118 = por %p116, %p117
    %p119 = scmp.ne.s32.totalorder %s105, %s106
    %p120 = scmp.eq.s32.totalorder %s20, 1
    %p121 = por %p119, %p120
    %p123 = scmp.ne.s32.totalorder %s106, %s122
    %p124 = scmp.eq.s32.totalorder %s20, 0
    %p125 = por %p123, %p124
    %s127 = sadd.s32 %s126, 1
    %p130 = scmp.eq.s32.totalorder %s14, 1
    %p131 = scmp.ne.s32.totalorder %s126, %s128
    %p132 = scmp.eq.s32.totalorder %s14, 0
    %p133 = por %p131, %p132
    %p134 = scmp.ne.s32.totalorder %s126, %s128
    %p135 = scmp.eq.s32.totalorder %s19, 1
    %p136 = por %p134, %p135
    %p137 = scmp.ne.s32.totalorder %s128, %s129
    %p138 = scmp.eq.s32.totalorder %s19, 0
    %p139 = por %p137, %p138
    %p140 = scmp.ne.s32.totalorder %s128, %s129
    %p141 = scmp.eq.s32.totalorder %s20, 1
    %p142 = por %p140, %p141
    %p144 = scmp.ne.s32.totalorder %s129, %s143
    %p145 = scmp.eq.s32.totalorder %s20, 0
    %p146 = por %p144, %p145
    %s148 = sadd.s32 %s147, 1
    %p151 = scmp.eq.s32.totalorder %s14, 1
    %p152 = scmp.ne.s32.totalorder %s147, %s149
    %p153 = scmp.eq.s32.totalorder %s14, 0
    %p154 = por %p152, %p153
    %p155 = scmp.ne.s32.totalorder %s147, %s149
    %p156 = scmp.eq.s32.totalorder %s19, 1
    %p157 = por %p155, %p156
    %p158 = scmp.ne.s32.totalorder %s149, %s150
    %p159 = scmp.eq.s32.totalorder %s19, 0
    %p160 = por %p158, %p159
    %p161 = scmp.ne.s32.totalorder %s149, %s150
    %p162 = scmp.eq.s32.totalorder %s20, 1
    %p163 = por %p161, %p162
    %p165 = scmp.ne.s32.totalorder %s150, %s164
    %p166 = scmp.eq.s32.totalorder %s20, 0
    %p167 = por %p165, %p166
    %s168 = ssub.s32 %s14, %s21
    %p169 = scmp.eq.s32.totalorder %s168, 0
    %s171 = sadd.s32 %s170, 1
    %s172 = scalar_select %p169, %s170, %s171
    %p175 = pneg %p169
    %p176 = scmp.eq.s32.totalorder %s14, 1
    %p177 = por %p175, %p176
    %p178 = scmp.ne.s32.totalorder %s170, %s173
    %p179 = scmp.eq.s32.totalorder %s14, 0
    %p180 = por %p178, %p179
    %p181 = scmp.ne.s32.totalorder %s170, %s173
    %p182 = scmp.eq.s32.totalorder %s19, 1
    %p183 = por %p181, %p182
    %p184 = scmp.ne.s32.totalorder %s173, %s174
    %p185 = scmp.eq.s32.totalorder %s19, 0
    %p186 = por %p184, %p185
    %p187 = scmp.ne.s32.totalorder %s173, %s174
    %p188 = scmp.eq.s32.totalorder %s20, 1
    %p189 = por %p187, %p188
    %p191 = scmp.ne.s32.totalorder %s174, %s190
    %p192 = scmp.eq.s32.totalorder %s20, 0
    %p193 = por %p191, %p192
    %s194 = ssub.s32 %s14, %s21
    %p195 = scmp.eq.s32.totalorder %s194, 0
    %s197 = sadd.s32 %s196, 1
    %s198 = scalar_select %p195, %s196, %s197
    %p201 = pneg %p195
    %p202 = scmp.eq.s32.totalorder %s14, 1
    %p203 = por %p201, %p202
    %p204 = scmp.ne.s32.totalorder %s196, %s199
    %p205 = scmp.eq.s32.totalorder %s14, 0
    %p206 = por %p204, %p205
    %p207 = scmp.ne.s32.totalorder %s196, %s199
    %p208 = scmp.eq.s32.totalorder %s19, 1
    %p209 = por %p207, %p208
    %p210 = scmp.ne.s32.totalorder %s199, %s200
    %p211 = scmp.eq.s32.totalorder %s19, 0
    %p212 = por %p210, %p211
    %p213 = scmp.ne.s32.totalorder %s199, %s200
    %p214 = scmp.eq.s32.totalorder %s20, 1
    %p215 = por %p213, %p214
    %p217 = scmp.ne.s32.totalorder %s200, %s216
    %p218 = scmp.eq.s32.totalorder %s20, 0
    %p219 = por %p217, %p218
    %p220 = scmp.le.s32.totalorder 1, %s14
    %p221 = scmp.lt.s32.totalorder %s14, 3
    %p222 = pnand %p220, %p221
    %p223 = pneg %p222
    // Predicated region
    $region9: #{mossformer_forward.3} parent=5 // pred_check
      _
    $region10: #{mossformer_forward.3} parent=5 // pred_check_branch
      %225 = sbr.rel (%p222) target = $region12
    $region11: #{mossformer_forward.3} parent=5 // pred_region
      %s226 = ssub.s32 %s14, 1
      // Predicated region
      $region13: #{mossformer_forward.3} parent=11 // pred_check
        %p227 = pneg %p139
      $region14: #{mossformer_forward.3} parent=11 // pred_check_branch
        %229 = sbr.rel (%p227) target = $region16
      $region15: #{mossformer_forward.3} parent=11 // pred_region
        _
      $region16: #{mossformer_forward.3} parent=11 // pred_fallthru
        _
      // Predicated region
      $region17: #{mossformer_forward.3} parent=11 // pred_check
        %p230 = pneg %p160
      $region18: #{mossformer_forward.3} parent=11 // pred_check_branch
        %232 = sbr.rel (%p230) target = $region20
      $region19: #{mossformer_forward.3} parent=11 // pred_region
        _
      $region20: #{mossformer_forward.3} parent=11 // pred_fallthru
        _
    $region12: #{mossformer_forward.3} parent=5 // pred_fallthru
      _
    %p233 = scmp.lt.s32.totalorder %s14, 2
    // Predicated region
    $region21: #{mossformer_forward.3} parent=5 // pred_check
      %p234 = pneg %p233
    $region22: #{mossformer_forward.3} parent=5 // pred_check_branch
      %236 = sbr.rel (%p234) target = $region24
    $region23: #{mossformer_forward.3} parent=5 // pred_region
      // Predicated region
      $region25: #{mossformer_forward.3} parent=23 // pred_check
        %p237 = pneg %p34
      $region26: #{mossformer_forward.3} parent=23 // pred_check_branch
        %239 = sbr.rel (%p237) target = $region28
      $region27: #{mossformer_forward.3} parent=23 // pred_region
        %p240 = scmp.lt.s32.totalorder %s14, 1
        %s241 = scalar_select %p240, %s14, 1
        %s242 = smul.addr %s241, 32
        %s243 = smul.addr %s242, 4
        %s244 = scalar_lea.vmem %s0, %s243
      $region28: #{mossformer_forward.3} parent=23 // pred_fallthru
        _
      // Predicated region
      $region29: #{mossformer_forward.3} parent=23 // pred_check
        %p245 = pneg %p60
      $region30: #{mossformer_forward.3} parent=23 // pred_check_branch
        %247 = sbr.rel (%p245) target = $region32
      $region31: #{mossformer_forward.3} parent=23 // pred_region
        %p248 = scmp.lt.s32.totalorder %s14, 1
        %s249 = scalar_select %p248, %s14, 1
        %s250 = smul.addr %s249, 4
        %s251 = smul.addr %s250, 4
        %s252 = scalar_lea.vmem %s1, %s251
      $region32: #{mossformer_forward.3} parent=23 // pred_fallthru
        _
      // Predicated region
      $region33: #{mossformer_forward.3} parent=23 // pred_check
        %p253 = pneg %p86
      $region34: #{mossformer_forward.3} parent=23 // pred_check_branch
        %255 = sbr.rel (%p253) target = $region36
      $region35: #{mossformer_forward.3} parent=23 // pred_region
        %p256 = scmp.lt.s32.totalorder %s14, 1
        %s257 = scalar_select %p256, %s14, 1
        %s258 = smul.addr %s257, 4
        %s259 = smul.addr %s258, 8
        %s260 = scalar_lea.vmem %s2, %s259
      $region36: #{mossformer_forward.3} parent=23 // pred_fallthru
        _
      // Predicated region
      $region37: #{mossformer_forward.3} parent=23 // pred_check
        %p261 = pneg %p112
      $region38: #{mossformer_forward.3} parent=23 // pred_check_branch
        %263 = sbr.rel (%p261) target = $region40
      $region39: #{mossformer_forward.3} parent=23 // pred_region
        %p264 = scmp.lt.s32.totalorder %s14, 1
        %s265 = scalar_select %p264, %s14, 1
        %s266 = smul.addr %s265, 4
        %s267 = smul.addr %s266, 4
        %s268 = scalar_lea.vmem %s3, %s267
      $region40: #{mossformer_forward.3} parent=23 // pred_fallthru
        _
    $region24: #{mossformer_forward.3} parent=5 // pred_fallthru
      _
    %p269 = scmp.le.s32.totalorder 1, %s14
    %p270 = scmp.lt.s32.totalorder %s14, 3
    %p271 = pnand %p269, %p270
    %p272 = pneg %p271
    // Predicated region
    $region41: #{mossformer_forward.3} parent=5 // pred_check
      _
    $region42: #{mossformer_forward.3} parent=5 // pred_check_branch
      %274 = sbr.rel (%p271) target = $region44
    $region43: #{mossformer_forward.3} parent=5 // pred_region
      %s275 = ssub.s32 %s14, 1
      %p276 = scmp.lt.s32.totalorder %s19, 1
      %s277 = scalar_select %p276, %s19, 1
      %s278 = smul.addr %s277, 32
      %s279 = smul.addr %s278, 4
      %s280 = scalar_lea.vmem %s0, %s279
      %p281 = pneg %p40
      %p282 = pneg %p37
      %p283 = scmp.lt.s32.totalorder %s19, 1
      %s284 = scalar_select %p283, %s19, 1
      %s285 = smul.addr %s284, 4
      %s286 = smul.addr %s285, 4
      %s287 = scalar_lea.vmem %s1, %s286
      %p288 = pneg %p66
      %p289 = pneg %p63
      %p290 = scmp.lt.s32.totalorder %s19, 1
      %s291 = scalar_select %p290, %s19, 1
      %s292 = smul.addr %s291, 4
      %s293 = smul.addr %s292, 8
      %s294 = scalar_lea.vmem %s2, %s293
      %p295 = pneg %p92
      %p296 = pneg %p89
      %p297 = scmp.lt.s32.totalorder %s19, 1
      %s298 = scalar_select %p297, %s19, 1
      %s299 = smul.addr %s298, 4
      %s300 = smul.addr %s299, 4
      %s301 = scalar_lea.vmem %s3, %s300
      %p302 = pneg %p118
      %p303 = pneg %p115
      %p304 = pneg %p139
      %p305 = pneg %p136
      %p306 = pneg %p160
      %p307 = pneg %p157
      %p308 = pneg %p186
      %p309 = pneg %p183
      %p310 = scmp.lt.s32.totalorder %s19, 1
      %s311 = scalar_select %p310, %s19, 1
      %s312 = smul.addr %s311, 8
      %s313 = smul.addr %s312, 8
      %s314 = scalar_lea.vmem %s6, %s313
      %p315 = pneg %p212
      %p316 = pneg %p209
      %p317 = scmp.lt.s32.totalorder %s19, 1
      %s318 = scalar_select %p317, %s19, 1
      %s319 = smul.addr %s318, 8
      %s320 = scalar_lea.vmem %s7, %s319
      %p321 = scmp.lt.s32.totalorder %s19, 1
      %s322 = scalar_select %p321, %s19, 1
      %s323 = smul.addr %s322, 32
      %s324 = smul.addr %s323, 4
      %s325 = scalar_lea.vmem %s0, %s324
      %p326 = scmp.lt.s32.totalorder %s19, 1
      %s327 = scalar_select %p326, %s19, 1
      %s328 = smul.addr %s327, 4
      %s329 = smul.addr %s328, 4
      %s330 = scalar_lea.vmem %s1, %s329
      %p331 = scmp.lt.s32.totalorder %s19, 1
      %s332 = scalar_select %p331, %s19, 1
      %s333 = smul.addr %s332, 4
      %s334 = smul.addr %s333, 8
      %s335 = scalar_lea.vmem %s2, %s334
      %p336 = scmp.lt.s32.totalorder %s19, 1
      %s337 = scalar_select %p336, %s19, 1
      %s338 = smul.addr %s337, 4
      %s339 = smul.addr %s338, 4
      %s340 = scalar_lea.vmem %s3, %s339
      %p341 = scmp.lt.s32.totalorder %s19, 1
      %s342 = scalar_select %p341, %s19, 1
      %s343 = smul.addr %s342, 8
      %s344 = smul.addr %s343, 8
      %s345 = scalar_lea.vmem %s6, %s344
      %p346 = scmp.lt.s32.totalorder %s19, 1
      %s347 = scalar_select %p346, %s19, 1
      %s348 = smul.addr %s347, 8
      %s349 = scalar_lea.vmem %s7, %s348
      %v351 = vld [vmem:[%s325] sm:$0xff]
      %v352 = vld [vmem:[%s325 + $0x8] sm:$0xff]
      %v353 = vld [vmem:[%s325 + $0x10] sm:$0xff]
      %v354 = vld [vmem:[%s325 + $0x18] sm:$0xff]
      %v355 = vld [vmem:[%s325 + $0x20] sm:$0xff]
      %v356 = vld [vmem:[%s325 + $0x28] sm:$0xff]
      %v357 = vld [vmem:[%s325 + $0x30] sm:$0xff]
      %v358 = vld [vmem:[%s325 + $0x38] sm:$0xff]
      %v359 = vld [vmem:[%s325 + $0x40] sm:$0xff]
      %v360 = vld [vmem:[%s325 + $0x48] sm:$0xff]
      %v361 = vld [vmem:[%s325 + $0x50] sm:$0xff]
      %v362 = vld [vmem:[%s325 + $0x58] sm:$0xff]
      %v363 = vld [vmem:[%s325 + $0x60] sm:$0xff]
      %v364 = vld [vmem:[%s325 + $0x68] sm:$0xff]
      %v365 = vld [vmem:[%s325 + $0x70] sm:$0xff]
      %v366 = vld [vmem:[%s325 + $0x78] sm:$0xff]
      %v367 = vld [vmem:[%s330] sm:$0xf]
      %v368 = vld [vmem:[%s330 + $0x4] sm:$0xf]
      %v369 = vld [vmem:[%s330 + $0x8] sm:$0xf]
      %v370 = vld [vmem:[%s330 + $0xc] sm:$0xf]
      %v371 = vld [vmem:[%s340] sm:$0xf]
      %v372 = vld [vmem:[%s340 + $0x4] sm:$0xf]
      %v373 = vld [vmem:[%s340 + $0x8] sm:$0xf]
      %v374 = vld [vmem:[%s340 + $0xc] sm:$0xf]
      %v375 = vld [vmem:[%s4] sm:$0xff]
      %v376 = vld [vmem:[%s4 + $0x8] sm:$0xff]
      %v377 = vld [vmem:[%s4 + $0x10] sm:$0xff]
      %v378 = vld [vmem:[%s4 + $0x18] sm:$0xff]
      %v379 = vld [vmem:[%s4 + $0x20] sm:$0xff]
      %v380 = vld [vmem:[%s4 + $0x28] sm:$0xff]
      %v381 = vld [vmem:[%s4 + $0x30] sm:$0xff]
      %v382 = vld [vmem:[%s4 + $0x38] sm:$0xff]
      %v387 = vunpack.c.l.b16 %v371
      %v388 = vunpack.c.l.b16 %v372
      %v389 = vunpack.c.l.b16 %v373
      %v390 = vunpack.c.l.b16 %v374
      %v391 = vpack.c.b16 %v388, %v387
      %v392 = vpack.c.b16 %v390, %v389
      %v401 = vunpack.c.l.b16 %v375
      %v402 = vunpack.c.h.b16 %v375
      %v403 = vunpack.c.l.b16 %v376
      %v404 = vunpack.c.h.b16 %v376
      %v405 = vunpack.c.l.b16 %v377
      %v406 = vunpack.c.h.b16 %v377
      %v407 = vunpack.c.l.b16 %v378
      %v408 = vunpack.c.h.b16 %v378
      %v409 = vunpack.c.l.b16 %v379
      %v410 = vunpack.c.h.b16 %v379
      %v411 = vunpack.c.l.b16 %v380
      %v412 = vunpack.c.h.b16 %v380
      %v413 = vunpack.c.l.b16 %v381
      %v414 = vunpack.c.h.b16 %v381
      %v415 = vunpack.c.l.b16 %v382
      %v416 = vunpack.c.h.b16 %v382
      %v417 = vpack.c.b16 %v409, %v401
      %v418 = vpack.c.b16 %v410, %v402
      %v419 = vpack.c.b16 %v411, %v403
      %v420 = vpack.c.b16 %v412, %v404
      %v421 = vpack.c.b16 %v413, %v405
      %v422 = vpack.c.b16 %v414, %v406
      %v423 = vpack.c.b16 %v415, %v407
      %v424 = vpack.c.b16 %v416, %v408
      %vm433 = vcmask 130048
      %v435 = vsel %vm433, %v391, 0
      %v438 = vsel %vm433, %v392, 0
      %440 = vmatprep.subr.bf16.mxu0 %v418
      %441 = vmatpush1.bf16.msra.mxu0 %v417
      %442 = vmatprep.subr.bf16.mxu0 0
      %443 = vmatpush1.bf16.msra.mxu0 0
      %444 = vmatprep.subr.bf16.mxu0 0
      %445 = vmatpush1.bf16.msra.mxu0 0
      %446 = vmatprep.subr.bf16.mxu0 0
      %447 = vmatpush1.bf16.msra.mxu0 0
      %448 = vmatprep.subr.bf16.mxu0 0
      %449 = vmatpush1.bf16.msra.mxu0 0
      %450 = vmatprep.subr.bf16.mxu0 0
      %451 = vmatpush1.bf16.msra.mxu0 0
      %452 = vmatprep.subr.bf16.mxu0 0
      %453 = vmatpush1.bf16.msra.mxu0 0
      %454 = vmatprep.subr.bf16.mxu0 0
      %455 = vmatpush1.bf16.msra.mxu0 0
      %456 = vmatprep.subr.bf16.mxu0 0
      %457 = vmatpush1.bf16.msra.mxu0 0
      %458 = vmatprep.subr.bf16.mxu0 0
      %459 = vmatpush1.bf16.msra.mxu0 0
      %460 = vmatprep.subr.bf16.mxu0 0
      %461 = vmatpush1.bf16.msra.mxu0 0
      %462 = vmatprep.subr.bf16.mxu0 0
      %463 = vmatpush1.bf16.msra.mxu0 0
      %464 = vmatprep.subr.bf16.mxu0 0
      %465 = vmatpush1.bf16.msra.mxu0 0
      %466 = vmatprep.subr.bf16.mxu0 0
      %467 = vmatpush1.bf16.msra.mxu0 0
      %468 = vmatprep.subr.bf16.mxu0 0
      %469 = vmatpush1.bf16.msra.mxu0 0
      %470 = vmatprep.subr.bf16.mxu0 0
      %471 = vmatpush1.bf16.msra.mxu0 0
      %472 = vmatprep.mubr.bf16.mxu0 0
      %473 = vmatmul.mubr.bf16.gmra.mrb[0].mxu0 %v435
      %v474 = vpop.f32.mrb[0].mxu0
      %v475 = vadd.f32 0.0, %v474
      %v476 = vpop.f32.mrb[0].mxu0
      %v477 = vadd.f32 0.0, %v476
      %v478 = vpop.f32.mrb[0].mxu0
      %v479 = vadd.f32 0.0, %v478
      %v480 = vpop.f32.mrb[0].mxu0
      %v481 = vadd.f32 0.0, %v480
      %482 = vmatprep.mubr.bf16.mxu0 0
      %483 = vmatmul.mubr.bf16.gmra.mrb[0].mxu0 %v438
      %v484 = vpop.f32.mrb[0].mxu0
      %v485 = vadd.f32 0.0, %v484
      %v486 = vpop.f32.mrb[0].mxu0
      %v487 = vadd.f32 0.0, %v486
      %v488 = vpop.f32.mrb[0].mxu0
      %v489 = vadd.f32 0.0, %v488
      %v490 = vpop.f32.mrb[0].mxu0
      %v491 = vadd.f32 0.0, %v490
      %492 = vdwg.mxu0
      %493 = vmatprep.subr.bf16.mxu0 %v420
      %494 = vmatpush1.bf16.msra.mxu0 %v419
      %495 = vmatprep.subr.bf16.mxu0 0
      %496 = vmatpush1.bf16.msra.mxu0 0
      %497 = vmatprep.subr.bf16.mxu0 0
      %498 = vmatpush1.bf16.msra.mxu0 0
      %499 = vmatprep.subr.bf16.mxu0 0
      %500 = vmatpush1.bf16.msra.mxu0 0
      %501 = vmatprep.subr.bf16.mxu0 0
      %502 = vmatpush1.bf16.msra.mxu0 0
      %503 = vmatprep.subr.bf16.mxu0 0
      %504 = vmatpush1.bf16.msra.mxu0 0
      %505 = vmatprep.subr.bf16.mxu0 0
      %506 = vmatpush1.bf16.msra.mxu0 0
      %507 = vmatprep.subr.bf16.mxu0 0
      %508 = vmatpush1.bf16.msra.mxu0 0
      %509 = vmatprep.subr.bf16.mxu0 0
      %510 = vmatpush1.bf16.msra.mxu0 0
      %511 = vmatprep.subr.bf16.mxu0 0
      %512 = vmatpush1.bf16.msra.mxu0 0
      %513 = vmatprep.subr.bf16.mxu0 0
      %514 = vmatpush1.bf16.msra.mxu0 0
      %515 = vmatprep.subr.bf16.mxu0 0
      %516 = vmatpush1.bf16.msra.mxu0 0
      %517 = vmatprep.subr.bf16.mxu0 0
      %518 = vmatpush1.bf16.msra.mxu0 0
      %519 = vmatprep.subr.bf16.mxu0 0
      %520 = vmatpush1.bf16.msra.mxu0 0
      %521 = vmatprep.subr.bf16.mxu0 0
      %522 = vmatpush1.bf16.msra.mxu0 0
      %523 = vmatprep.subr.bf16.mxu0 0
      %524 = vmatpush1.bf16.msra.mxu0 0
      %525 = vmatprep.mubr.bf16.mxu0 0
      %526 = vmatmul.mubr.bf16.gmra.mrb[0].mxu0 %v435
      %v527 = vpop.f32.mrb[0].mxu0
      %v528 = vadd.f32 0.0, %v527
      %v529 = vpop.f32.mrb[0].mxu0
      %v530 = vadd.f32 0.0, %v529
      %v531 = vpop.f32.mrb[0].mxu0
      %v532 = vadd.f32 0.0, %v531
      %v533 = vpop.f32.mrb[0].mxu0
      %v534 = vadd.f32 0.0, %v533
      %535 = vmatprep.mubr.bf16.mxu0 0
      %536 = vmatmul.mubr.bf16.gmra.mrb[0].mxu0 %v438
      %v537 = vpop.f32.mrb[0].mxu0
      %v538 = vadd.f32 0.0, %v537
      %v539 = vpop.f32.mrb[0].mxu0
      %v540 = vadd.f32 0.0, %v539
      %v541 = vpop.f32.mrb[0].mxu0
      %v542 = vadd.f32 0.0, %v541
      %v543 = vpop.f32.mrb[0].mxu0
      %v544 = vadd.f32 0.0, %v543
      %545 = vdwg.mxu0
      %546 = vmatprep.subr.bf16.mxu0 %v422
      %547 = vmatpush1.bf16.msra.mxu0 %v421
      %548 = vmatprep.subr.bf16.mxu0 0
      %549 = vmatpush1.bf16.msra.mxu0 0
      %550 = vmatprep.subr.bf16.mxu0 0
      %551 = vmatpush1.bf16.msra.mxu0 0
      %552 = vmatprep.subr.bf16.mxu0 0
      %553 = vmatpush1.bf16.msra.mxu0 0
      %554 = vmatprep.subr.bf16.mxu0 0
      %555 = vmatpush1.bf16.msra.mxu0 0
      %556 = vmatprep.subr.bf16.mxu0 0
      %557 = vmatpush1.bf16.msra.mxu0 0
      %558 = vmatprep.subr.bf16.mxu0 0
      %559 = vmatpush1.bf16.msra.mxu0 0
      %560 = vmatprep.subr.bf16.mxu0 0
      %561 = vmatpush1.bf16.msra.mxu0 0
      %562 = vmatprep.subr.bf16.mxu0 0
      %563 = vmatpush1.bf16.msra.mxu0 0
      %564 = vmatprep.subr.bf16.mxu0 0
      %565 = vmatpush1.bf16.msra.mxu0 0
      %566 = vmatprep.subr.bf16.mxu0 0
      %567 = vmatpush1.bf16.msra.mxu0 0
      %568 = vmatprep.subr.bf16.mxu0 0
      %569 = vmatpush1.bf16.msra.mxu0 0
      %570 = vmatprep.subr.bf16.mxu0 0
      %571 = vmatpush1.bf16.msra.mxu0 0
      %572 = vmatprep.subr.bf16.mxu0 0
      %573 = vmatpush1.bf16.msra.mxu0 0
      %574 = vmatprep.subr.bf16.mxu0 0
      %575 = vmatpush1.bf16.msra.mxu0 0
      %576 = vmatprep.subr.bf16.mxu0 0
      %577 = vmatpush1.bf16.msra.mxu0 0
      %578 = vmatprep.mubr.bf16.mxu0 0
      %579 = vmatmul.mubr.bf16.gmra.mrb[0].mxu0 %v435
      %v580 = vpop.f32.mrb[0].mxu0
      %v581 = vadd.f32 0.0, %v580
      %v582 = vpop.f32.mrb[0].mxu0
      %v583 = vadd.f32 0.0, %v582
      %v584 = vpop.f32.mrb[0].mxu0
      %v585 = vadd.f32 0.0, %v584
      %v586 = vpop.f32.mrb[0].mxu0
      %v587 = vadd.f32 0.0, %v586
      %588 = vmatprep.mubr.bf16.mxu0 0
      %589 = vmatmul.mubr.bf16.gmra.mrb[0].mxu0 %v438
      %v590 = vpop.f32.mrb[0].mxu0
      %v591 = vadd.f32 0.0, %v590
      %v592 = vpop.f32.mrb[0].mxu0
      %v593 = vadd.f32 0.0, %v592
      %v594 = vpop.f32.mrb[0].mxu0
      %v595 = vadd.f32 0.0, %v594
      %v596 = vpop.f32.mrb[0].mxu0
      %v597 = vadd.f32 0.0, %v596
      %598 = vdwg.mxu0
      %599 = vmatprep.subr.bf16.mxu0 %v424
      %600 = vmatpush1.bf16.msra.mxu0 %v423
      %601 = vmatprep.subr.bf16.mxu0 0
      %602 = vmatpush1.bf16.msra.mxu0 0
      %603 = vmatprep.subr.bf16.mxu0 0
      %604 = vmatpush1.bf16.msra.mxu0 0
      %605 = vmatprep.subr.bf16.mxu0 0
      %606 = vmatpush1.bf16.msra.mxu0 0
      %607 = vmatprep.subr.bf16.mxu0 0
      %608 = vmatpush1.bf16.msra.mxu0 0
      %609 = vmatprep.subr.bf16.mxu0 0
      %610 = vmatpush1.bf16.msra.mxu0 0
      %611 = vmatprep.subr.bf16.mxu0 0
      %612 = vmatpush1.bf16.msra.mxu0 0
      %613 = vmatprep.subr.bf16.mxu0 0
      %614 = vmatpush1.bf16.msra.mxu0 0
      %615 = vmatprep.subr.bf16.mxu0 0
      %616 = vmatpush1.bf16.msra.mxu0 0
      %617 = vmatprep.subr.bf16.mxu0 0
      %618 = vmatpush1.bf16.msra.mxu0 0
      %619 = vmatprep.subr.bf16.mxu0 0
      %620 = vmatpush1.bf16.msra.mxu0 0
      %621 = vmatprep.subr.bf16.mxu0 0
      %622 = vmatpush1.bf16.msra.mxu0 0
      %623 = vmatprep.subr.bf16.mxu0 0
      %624 = vmatpush1.bf16.msra.mxu0 0
      %625 = vmatprep.subr.bf16.mxu0 0
      %626 = vmatpush1.bf16.msra.mxu0 0
      %627 = vmatprep.subr.bf16.mxu0 0
      %628 = vmatpush1.bf16.msra.mxu0 0
      %629 = vmatprep.subr.bf16.mxu0 0
      %630 = vmatpush1.bf16.msra.mxu0 0
      %631 = vmatprep.mubr.bf16.mxu0 0
      %632 = vmatmul.mubr.bf16.gmra.mrb[0].mxu0 %v435
      %v633 = vpop.f32.mrb[0].mxu0
      %v634 = vadd.f32 0.0, %v633
      %v635 = vpop.f32.mrb[0].mxu0
      %v636 = vadd.f32 0.0, %v635
      %v637 = vpop.f32.mrb[0].mxu0
      %v638 = vadd.f32 0.0, %v637
      %v639 = vpop.f32.mrb[0].mxu0
      %v640 = vadd.f32 0.0, %v639
      %641 = vmatprep.mubr.bf16.mxu0 0
      %642 = vmatmul.mubr.bf16.gmra.mrb[0].mxu0 %v438
      %v643 = vpop.f32.mrb[0].mxu0
      %v644 = vadd.f32 0.0, %v643
      %v645 = vpop.f32.mrb[0].mxu0
      %v646 = vadd.f32 0.0, %v645
      %v647 = vpop.f32.mrb[0].mxu0
      %v648 = vadd.f32 0.0, %v647
      %v649 = vpop.f32.mrb[0].mxu0
      %v650 = vadd.f32 0.0, %v649
      %651 = vdwg.mxu0
      %v656 = vunpack.c.l.b16 %v367
      %v657 = vunpack.c.l.b16 %v368
      %v658 = vunpack.c.l.b16 %v369
      %v659 = vunpack.c.l.b16 %v370
      %v660 = vpack.c.b16 %v657, %v656
      %v661 = vpack.c.b16 %v659, %v658
      %v678 = vunpack.c.l.b16 %v351
      %v679 = vunpack.c.h.b16 %v351
      %v680 = vunpack.c.l.b16 %v352
      %v681 = vunpack.c.h.b16 %v352
      %v682 = vunpack.c.l.b16 %v353
      %v683 = vunpack.c.h.b16 %v353
      %v684 = vunpack.c.l.b16 %v354
      %v685 = vunpack.c.h.b16 %v354
      %v686 = vunpack.c.l.b16 %v355
      %v687 = vunpack.c.h.b16 %v355
      %v688 = vunpack.c.l.b16 %v356
      %v689 = vunpack.c.h.b16 %v356
      %v690 = vunpack.c.l.b16 %v357
      %v691 = vunpack.c.h.b16 %v357
      %v692 = vunpack.c.l.b16 %v358
      %v693 = vunpack.c.h.b16 %v358
      %v694 = vunpack.c.l.b16 %v359
      %v695 = vunpack.c.h.b16 %v359
      %v696 = vunpack.c.l.b16 %v360
      %v697 = vunpack.c.h.b16 %v360
      %v698 = vunpack.c.l.b16 %v361
      %v699 = vunpack.c.h.b16 %v361
      %v700 = vunpack.c.l.b16 %v362
      %v701 = vunpack.c.h.b16 %v362
      %v702 = vunpack.c.l.b16 %v363
      %v703 = vunpack.c.h.b16 %v363
      %v704 = vunpack.c.l.b16 %v364
      %v705 = vunpack.c.h.b16 %v364
      %v706 = vunpack.c.l.b16 %v365
      %v707 = vunpack.c.h.b16 %v365
      %v708 = vunpack.c.l.b16 %v366
      %v709 = vunpack.c.h.b16 %v366
      %v710 = vpack.c.b16 %v686, %v678
      %v711 = vpack.c.b16 %v687, %v679
      %v712 = vpack.c.b16 %v688, %v680
      %v713 = vpack.c.b16 %v689, %v681
      %v714 = vpack.c.b16 %v690, %v682
      %v715 = vpack.c.b16 %v691, %v683
      %v716 = vpack.c.b16 %v692, %v684
      %v717 = vpack.c.b16 %v693, %v685
      %v718 = vpack.c.b16 %v702, %v694
      %v719 = vpack.c.b16 %v703, %v695
      %v720 = vpack.c.b16 %v704, %v696
      %v721 = vpack.c.b16 %v705, %v697
      %v722 = vpack.c.b16 %v706, %v698
      %v723 = vpack.c.b16 %v707, %v699
      %v724 = vpack.c.b16 %v708, %v700
      %v725 = vpack.c.b16 %v709, %v701
      %vm742 = vcmask 261120
      %v744 = vsel %vm742, %v660, 0
      %v747 = vsel %vm742, %v661, 0
      %749 = vmatprep.subr.bf16.mxu0 %v711
      %750 = vmatpush1.bf16.msra.mxu0 %v710
      %751 = vmatprep.subr.bf16.mxu0 %v719
      %752 = vmatpush1.bf16.msra.mxu0 %v718
      %753 = vmatprep.subr.bf16.mxu0 0
      %754 = vmatpush1.bf16.msra.mxu0 0
      %755 = vmatprep.subr.bf16.mxu0 0
      %756 = vmatpush1.bf16.msra.mxu0 0
      %757 = vmatprep.subr.bf16.mxu0 0
      %758 = vmatpush1.bf16.msra.mxu0 0
      %759 = vmatprep.subr.bf16.mxu0 0
      %760 = vmatpush1.bf16.msra.mxu0 0
      %761 = vmatprep.subr.bf16.mxu0 0
      %762 = vmatpush1.bf16.msra.mxu0 0
      %763 = vmatprep.subr.bf16.mxu0 0
      %764 = vmatpush1.bf16.msra.mxu0 0
      %765 = vmatprep.subr.bf16.mxu0 0
      %766 = vmatpush1.bf16.msra.mxu0 0
      %767 = vmatprep.subr.bf16.mxu0 0
      %768 = vmatpush1.bf16.msra.mxu0 0
      %769 = vmatprep.subr.bf16.mxu0 0
      %770 = vmatpush1.bf16.msra.mxu0 0
      %771 = vmatprep.subr.bf16.mxu0 0
      %772 = vmatpush1.bf16.msra.mxu0 0
      %773 = vmatprep.subr.bf16.mxu0 0
      %774 = vmatpush1.bf16.msra.mxu0 0
      %775 = vmatprep.subr.bf16.mxu0 0
      %776 = vmatpush1.bf16.msra.mxu0 0
      %777 = vmatprep.subr.bf16.mxu0 0
      %778 = vmatpush1.bf16.msra.mxu0 0
      %779 = vmatprep.subr.bf16.mxu0 0
      %780 = vmatpush1.bf16.msra.mxu0 0
      %781 = vmatprep.mubr.bf16.mxu0 0
      %782 = vmatmul.mubr.bf16.gmra.mrb[0].mxu0 %v744
      %v783 = vpop.f32.mrb[0].mxu0
      %v784 = vadd.f32 %v475, %v783
      %v785 = vpop.f32.mrb[0].mxu0
      %v786 = vadd.f32 %v477, %v785
      %v787 = vpop.f32.mrb[0].mxu0
      %v788 = vadd.f32 %v479, %v787
      %v789 = vpop.f32.mrb[0].mxu0
      %v790 = vadd.f32 %v481, %v789
      %791 = vmatprep.mubr.bf16.mxu0 0
      %792 = vmatmul.mubr.bf16.gmra.mrb[0].mxu0 %v747
      %v793 = vpop.f32.mrb[0].mxu0
      %v794 = vadd.f32 %v485, %v793
      %v795 = vpop.f32.mrb[0].mxu0
      %v796 = vadd.f32 %v487, %v795
      %v797 = vpop.f32.mrb[0].mxu0
      %v798 = vadd.f32 %v489, %v797
      %v799 = vpop.f32.mrb[0].mxu0
      %v800 = vadd.f32 %v491, %v799
      %801 = vdwg.mxu0
      %802 = vmatprep.subr.bf16.mxu0 %v713
      %803 = vmatpush1.bf16.msra.mxu0 %v712
      %804 = vmatprep.subr.bf16.mxu0 %v721
      %805 = vmatpush1.bf16.msra.mxu0 %v720
      %806 = vmatprep.subr.bf16.mxu0 0
      %807 = vmatpush1.bf16.msra.mxu0 0
      %808 = vmatprep.subr.bf16.mxu0 0
      %809 = vmatpush1.bf16.msra.mxu0 0
      %810 = vmatprep.subr.bf16.mxu0 0
      %811 = vmatpush1.bf16.msra.mxu0 0
      %812 = vmatprep.subr.bf16.mxu0 0
      %813 = vmatpush1.bf16.msra.mxu0 0
      %814 = vmatprep.subr.bf16.mxu0 0
      %815 = vmatpush1.bf16.msra.mxu0 0
      %816 = vmatprep.subr.bf16.mxu0 0
      %817 = vmatpush1.bf16.msra.mxu0 0
      %818 = vmatprep.subr.bf16.mxu0 0
      %819 = vmatpush1.bf16.msra.mxu0 0
      %820 = vmatprep.subr.bf16.mxu0 0
      %821 = vmatpush1.bf16.msra.mxu0 0
      %822 = vmatprep.subr.bf16.mxu0 0
      %823 = vmatpush1.bf16.msra.mxu0 0
      %824 = vmatprep.subr.bf16.mxu0 0
      %825 = vmatpush1.bf16.msra.mxu0 0
      %826 = vmatprep.subr.bf16.mxu0 0
      %827 = vmatpush1.bf16.msra.mxu0 0
      %828 = vmatprep.subr.bf16.mxu0 0
      %829 = vmatpush1.bf16.msra.mxu0 0
      %830 = vmatprep.subr.bf16.mxu0 0
      %831 = vmatpush1.bf16.msra.mxu0 0
      %832 = vmatprep.subr.bf16.mxu0 0
      %833 = vmatpush1.bf16.msra.mxu0 0
      %834 = vmatprep.mubr.bf16.mxu0 0
      %835 = vmatmul.mubr.bf16.gmra.mrb[0].mxu0 %v744
      %v836 = vpop.f32.mrb[0].mxu0
      %v837 = vadd.f32 %v528, %v836
      %v838 = vpop.f32.mrb[0].mxu0
      %v839 = vadd.f32 %v530, %v838
      %v840 = vpop.f32.mrb[0].mxu0
      %v841 = vadd.f32 %v532, %v840
      %v842 = vpop.f32.mrb[0].mxu0
      %v843 = vadd.f32 %v534, %v842
      %844 = vmatprep.mubr.bf16.mxu0 0
      %845 = vmatmul.mubr.bf16.gmra.mrb[0].mxu0 %v747
      %v846 = vpop.f32.mrb[0].mxu0
      %v847 = vadd.f32 %v538, %v846
      %v848 = vpop.f32.mrb[0].mxu0
      %v849 = vadd.f32 %v540, %v848
      %v850 = vpop.f32.mrb[0].mxu0
      %v851 = vadd.f32 %v542, %v850
      %v852 = vpop.f32.mrb[0].mxu0
      %v853 = vadd.f32 %v544, %v852
      %854 = vdwg.mxu0
      %855 = vmatprep.subr.bf16.mxu0 %v715
      %856 = vmatpush1.bf16.msra.mxu0 %v714
      %857 = vmatprep.subr.bf16.mxu0 %v723
      %858 = vmatpush1.bf16.msra.mxu0 %v722
      %859 = vmatprep.subr.bf16.mxu0 0
      %860 = vmatpush1.bf16.msra.mxu0 0
      %861 = vmatprep.subr.bf16.mxu0 0
      %862 = vmatpush1.bf16.msra.mxu0 0
      %863 = vmatprep.subr.bf16.mxu0 0
      %864 = vmatpush1.bf16.msra.mxu0 0
      %865 = vmatprep.subr.bf16.mxu0 0
      %866 = vmatpush1.bf16.msra.mxu0 0
      %867 = vmatprep.subr.bf16.mxu0 0
      %868 = vmatpush1.bf16.msra.mxu0 0
      %869 = vmatprep.subr.bf16.mxu0 0
      %870 = vmatpush1.bf16.msra.mxu0 0
      %871 = vmatprep.subr.bf16.mxu0 0
      %872 = vmatpush1.bf16.msra.mxu0 0
      %873 = vmatprep.subr.bf16.mxu0 0
      %874 = vmatpush1.bf16.msra.mxu0 0
      %875 = vmatprep.subr.bf16.mxu0 0
      %876 = vmatpush1.bf16.msra.mxu0 0
      %877 = vmatprep.subr.bf16.mxu0 0
      %878 = vmatpush1.bf16.msra.mxu0 0
      %879 = vmatprep.subr.bf16.mxu0 0
      %880 = vmatpush1.bf16.msra.mxu0 0
      %881 = vmatprep.subr.bf16.mxu0 0
      %882 = vmatpush1.bf16.msra.mxu0 0
      %883 = vmatprep.subr.bf16.mxu0 0
      %884 = vmatpush1.bf16.msra.mxu0 0
      %885 = vmatprep.subr.bf16.mxu0 0
      %886 = vmatpush1.bf16.msra.mxu0 0
      %887 = vmatprep.mubr.bf16.mxu0 0
      %888 = vmatmul.mubr.bf16.gmra.mrb[0].mxu0 %v744
      %v889 = vpop.f32.mrb[0].mxu0
      %v890 = vadd.f32 %v581, %v889
      %v891 = vpop.f32.mrb[0].mxu0
      %v892 = vadd.f32 %v583, %v891
      %v893 = vpop.f32.mrb[0].mxu0
      %v894 = vadd.f32 %v585, %v893
      %v895 = vpop.f32.mrb[0].mxu0
      %v896 = vadd.f32 %v587, %v895
      %897 = vmatprep.mubr.bf16.mxu0 0
      %898 = vmatmul.mubr.bf16.gmra.mrb[0].mxu0 %v747
      %v899 = vpop.f32.mrb[0].mxu0
      %v900 = vadd.f32 %v591, %v899
      %v901 = vpop.f32.mrb[0].mxu0
      %v902 = vadd.f32 %v593, %v901
      %v903 = vpop.f32.mrb[0].mxu0
      %v904 = vadd.f32 %v595, %v903
      %v905 = vpop.f32.mrb[0].mxu0
      %v906 = vadd.f32 %v597, %v905
      %907 = vdwg.mxu0
      %908 = vmatprep.subr.bf16.mxu0 %v717
      %909 = vmatpush1.bf16.msra.mxu0 %v716
      %910 = vmatprep.subr.bf16.mxu0 %v725
      %911 = vmatpush1.bf16.msra.mxu0 %v724
      %912 = vmatprep.subr.bf16.mxu0 0
      %913 = vmatpush1.bf16.msra.mxu0 0
      %914 = vmatprep.subr.bf16.mxu0 0
      %915 = vmatpush1.bf16.msra.mxu0 0
      %916 = vmatprep.subr.bf16.mxu0 0
      %917 = vmatpush1.bf16.msra.mxu0 0
      %918 = vmatprep.subr.bf16.mxu0 0
      %919 = vmatpush1.bf16.msra.mxu0 0
      %920 = vmatprep.subr.bf16.mxu0 0
      %921 = vmatpush1.bf16.msra.mxu0 0
      %922 = vmatprep.subr.bf16.mxu0 0
      %923 = vmatpush1.bf16.msra.mxu0 0
      %924 = vmatprep.subr.bf16.mxu0 0
      %925 = vmatpush1.bf16.msra.mxu0 0
      %926 = vmatprep.subr.bf16.mxu0 0
      %927 = vmatpush1.bf16.msra.mxu0 0
      %928 = vmatprep.subr.bf16.mxu0 0
      %929 = vmatpush1.bf16.msra.mxu0 0
      %930 = vmatprep.subr.bf16.mxu0 0
      %931 = vmatpush1.bf16.msra.mxu0 0
      %932 = vmatprep.subr.bf16.mxu0 0
      %933 = vmatpush1.bf16.msra.mxu0 0
      %934 = vmatprep.subr.bf16.mxu0 0
      %935 = vmatpush1.bf16.msra.mxu0 0
      %936 = vmatprep.subr.bf16.mxu0 0
      %937 = vmatpush1.bf16.msra.mxu0 0
      %938 = vmatprep.subr.bf16.mxu0 0
      %939 = vmatpush1.bf16.msra.mxu0 0
      %940 = vmatprep.mubr.bf16.mxu0 0
      %941 = vmatmul.mubr.bf16.gmra.mrb[0].mxu0 %v744
      %v942 = vpop.f32.mrb[0].mxu0
      %v943 = vadd.f32 %v634, %v942
      %v944 = vpop.f32.mrb[0].mxu0
      %v945 = vadd.f32 %v636, %v944
      %v946 = vpop.f32.mrb[0].mxu0
      %v947 = vadd.f32 %v638, %v946
      %v948 = vpop.f32.mrb[0].mxu0
      %v949 = vadd.f32 %v640, %v948
      %950 = vmatprep.mubr.bf16.mxu0 0
      %951 = vmatmul.mubr.bf16.gmra.mrb[0].mxu0 %v747
      %v952 = vpop.f32.mrb[0].mxu0
      %v953 = vadd.f32 %v644, %v952
      %v954 = vpop.f32.mrb[0].mxu0
      %v955 = vadd.f32 %v646, %v954
      %v956 = vpop.f32.mrb[0].mxu0
      %v957 = vadd.f32 %v648, %v956
      %v958 = vpop.f32.mrb[0].mxu0
      %v959 = vadd.f32 %v650, %v958
      %960 = vdwg.mxu0
      %v961 = vld [vmem:[%s335] sm:$0xff]
      %v962 = vld [vmem:[%s335 + $0x8] sm:$0xff]
      %v963 = vld [vmem:[%s335 + $0x10] sm:$0xff]
      %v964 = vld [vmem:[%s335 + $0x18] sm:$0xff]
      %966 = vset.pattern.permute.xlu0 0
      %967 = vperm.xlu0 %966, %v961
      %v968 = vpop.permute.xlu0 %967
      %971 = vset.pattern.permute.xlu0 0
      %972 = vperm.xlu0 %971, %v962
      %v973 = vpop.permute.xlu0 %972
      %976 = vset.pattern.permute.xlu0 0
      %977 = vperm.xlu0 %976, %v963
      %v978 = vpop.permute.xlu0 %977
      %981 = vset.pattern.permute.xlu0 0
      %982 = vperm.xlu0 %981, %v964
      %v983 = vpop.permute.xlu0 %982
      %v985 = vadd.f32 %v784, %v968
      %v986 = vadd.f32 %v786, %v968
      %v987 = vadd.f32 %v837, %v968
      %v988 = vadd.f32 %v839, %v968
      %v989 = vadd.f32 %v890, %v968
      %v990 = vadd.f32 %v892, %v968
      %v991 = vadd.f32 %v943, %v968
      %v992 = vadd.f32 %v945, %v968
      %v993 = vadd.f32 %v788, %v973
      %v994 = vadd.f32 %v790, %v973
      %v995 = vadd.f32 %v841, %v973
      %v996 = vadd.f32 %v843, %v973
      %v997 = vadd.f32 %v894, %v973
      %v998 = vadd.f32 %v896, %v973
      %v999 = vadd.f32 %v947, %v973
      %v1000 = vadd.f32 %v949, %v973
      %v1001 = vadd.f32 %v794, %v978
      %v1002 = vadd.f32 %v796, %v978
      %v1003 = vadd.f32 %v847, %v978
      %v1004 = vadd.f32 %v849, %v978
      %v1005 = vadd.f32 %v900, %v978
      %v1006 = vadd.f32 %v902, %v978
      %v1007 = vadd.f32 %v953, %v978
      %v1008 = vadd.f32 %v955, %v978
      %v1009 = vadd.f32 %v798, %v983
      %v1010 = vadd.f32 %v800, %v983
      %v1011 = vadd.f32 %v851, %v983
      %v1012 = vadd.f32 %v853, %v983
      %v1013 = vadd.f32 %v904, %v983
      %v1014 = vadd.f32 %v906, %v983
      %v1015 = vadd.f32 %v957, %v983
      %v1016 = vadd.f32 %v959, %v983
      %v1017 = vmax.f32 %v985, 0.0
      %v1018 = vmax.f32 %v986, 0.0
      %v1019 = vmax.f32 %v987, 0.0
      %v1020 = vmax.f32 %v988, 0.0
      %v1021 = vmax.f32 %v989, 0.0
      %v1022 = vmax.f32 %v990, 0.0
      %v1023 = vmax.f32 %v991, 0.0
      %v1024 = vmax.f32 %v992, 0.0
      %v1025 = vmax.f32 %v993, 0.0
      %v1026 = vmax.f32 %v994, 0.0
      %v1027 = vmax.f32 %v995, 0.0
      %v1028 = vmax.f32 %v996, 0.0
      %v1029 = vmax.f32 %v997, 0.0
      %v1030 = vmax.f32 %v998, 0.0
      %v1031 = vmax.f32 %v999, 0.0
      %v1032 = vmax.f32 %v1000, 0.0
      %v1033 = vmax.f32 %v1001, 0.0
      %v1034 = vmax.f32 %v1002, 0.0
      %v1035 = vmax.f32 %v1003, 0.0
      %v1036 = vmax.f32 %v1004, 0.0
      %v1037 = vmax.f32 %v1005, 0.0
      %v1038 = vmax.f32 %v1006, 0.0
      %v1039 = vmax.f32 %v1007, 0.0
      %v1040 = vmax.f32 %v1008, 0.0
      %v1041 = vmax.f32 %v1009, 0.0
      %v1042 = vmax.f32 %v1010, 0.0
      %v1043 = vmax.f32 %v1011, 0.0
      %v1044 = vmax.f32 %v1012, 0.0
      %v1045 = vmax.f32 %v1013, 0.0
      %v1046 = vmax.f32 %v1014, 0.0
      %v1047 = vmax.f32 %v1015, 0.0
      %v1048 = vmax.f32 %v1016, 0.0
      %v1049 = vunpack.c.l.bf16 %v351
      %v1050 = vunpack.c.h.bf16 %v351
      %v1051 = vunpack.c.l.bf16 %v352
      %v1052 = vunpack.c.h.bf16 %v352
      %v1053 = vunpack.c.l.bf16 %v353
      %v1054 = vunpack.c.h.bf16 %v353
      %v1055 = vunpack.c.l.bf16 %v354
      %v1056 = vunpack.c.h.bf16 %v354
      %v1057 = vunpack.c.l.bf16 %v355
      %v1058 = vunpack.c.h.bf16 %v355
      %v1059 = vunpack.c.l.bf16 %v356
      %v1060 = vunpack.c.h.bf16 %v356
      %v1061 = vunpack.c.l.bf16 %v357
      %v1062 = vunpack.c.h.bf16 %v357
      %v1063 = vunpack.c.l.bf16 %v358
      %v1064 = vunpack.c.h.bf16 %v358
      %v1065 = vunpack.c.l.bf16 %v359
      %v1066 = vunpack.c.h.bf16 %v359
      %v1067 = vunpack.c.l.bf16 %v360
      %v1068 = vunpack.c.h.bf16 %v360
      %v1069 = vunpack.c.l.bf16 %v361
      %v1070 = vunpack.c.h.bf16 %v361
      %v1071 = vunpack.c.l.bf16 %v362
      %v1072 = vunpack.c.h.bf16 %v362
      %v1073 = vunpack.c.l.bf16 %v363
      %v1074 = vunpack.c.h.bf16 %v363
      %v1075 = vunpack.c.l.bf16 %v364
      %v1076 = vunpack.c.h.bf16 %v364
      %v1077 = vunpack.c.l.bf16 %v365
      %v1078 = vunpack.c.h.bf16 %v365
      %v1079 = vunpack.c.l.bf16 %v366
      %v1080 = vunpack.c.h.bf16 %v366
      %v1081 = vmul.f32 %v1049, %v1017
      %v1082 = vmul.f32 %v1050, %v1018
      %v1083 = vmul.f32 %v1051, %v1019
      %v1084 = vmul.f32 %v1052, %v1020
      %v1085 = vmul.f32 %v1053, %v1021
      %v1086 = vmul.f32 %v1054, %v1022
      %v1087 = vmul.f32 %v1055, %v1023
      %v1088 = vmul.f32 %v1056, %v1024
      %v1089 = vmul.f32 %v1057, %v1025
      %v1090 = vmul.f32 %v1058, %v1026
      %v1091 = vmul.f32 %v1059, %v1027
      %v1092 = vmul.f32 %v1060, %v1028
      %v1093 = vmul.f32 %v1061, %v1029
      %v1094 = vmul.f32 %v1062, %v1030
      %v1095 = vmul.f32 %v1063, %v1031
      %v1096 = vmul.f32 %v1064, %v1032
      %v1097 = vmul.f32 %v1065, %v1033
      %v1098 = vmul.f32 %v1066, %v1034
      %v1099 = vmul.f32 %v1067, %v1035
      %v1100 = vmul.f32 %v1068, %v1036
      %v1101 = vmul.f32 %v1069, %v1037
      %v1102 = vmul.f32 %v1070, %v1038
      %v1103 = vmul.f32 %v1071, %v1039
      %v1104 = vmul.f32 %v1072, %v1040
      %v1105 = vmul.f32 %v1073, %v1041
      %v1106 = vmul.f32 %v1074, %v1042
      %v1107 = vmul.f32 %v1075, %v1043
      %v1108 = vmul.f32 %v1076, %v1044
      %v1109 = vmul.f32 %v1077, %v1045
      %v1110 = vmul.f32 %v1078, %v1046
      %v1111 = vmul.f32 %v1079, %v1047
      %v1112 = vmul.f32 %v1080, %v1048
      %v1113 = vpack.c.bf16 %v1089, %v1081
      %v1114 = vpack.c.bf16 %v1090, %v1082
      %v1115 = vpack.c.bf16 %v1091, %v1083
      %v1116 = vpack.c.bf16 %v1092, %v1084
      %v1117 = vpack.c.bf16 %v1093, %v1085
      %v1118 = vpack.c.bf16 %v1094, %v1086
      %v1119 = vpack.c.bf16 %v1095, %v1087
      %v1120 = vpack.c.bf16 %v1096, %v1088
      %v1121 = vpack.c.bf16 %v1105, %v1097
      %v1122 = vpack.c.bf16 %v1106, %v1098
      %v1123 = vpack.c.bf16 %v1107, %v1099
      %v1124 = vpack.c.bf16 %v1108, %v1100
      %v1125 = vpack.c.bf16 %v1109, %v1101
      %v1126 = vpack.c.bf16 %v1110, %v1102
      %v1127 = vpack.c.bf16 %v1111, %v1103
      %v1128 = vpack.c.bf16 %v1112, %v1104
      %v1129 = vld [vmem:[%s5] sm:$0xf]
      %v1130 = vld [vmem:[%s5 + $0x4] sm:$0xf]
      %v1133 = vunpack.c.l.b16 %v1129
      %v1134 = vunpack.c.l.b16 %v1130
      %v1135 = vpack.c.b16 %v1134, %v1133
      %v1137 = vsel %vm742, %v1135, 0
      %1139 = vmatprep.subr.bf16.mxu0 %v1114
      %1140 = vmatpush1.bf16.msra.mxu0 %v1113
      %1141 = vmatprep.subr.bf16.mxu0 %v1122
      %1142 = vmatpush1.bf16.msra.mxu0 %v1121
      %1143 = vmatprep.subr.bf16.mxu0 0
      %1144 = vmatpush1.bf16.msra.mxu0 0
      %1145 = vmatprep.subr.bf16.mxu0 0
      %1146 = vmatpush1.bf16.msra.mxu0 0
      %1147 = vmatprep.subr.bf16.mxu0 0
      %1148 = vmatpush1.bf16.msra.mxu0 0
      %1149 = vmatprep.subr.bf16.mxu0 0
      %1150 = vmatpush1.bf16.msra.mxu0 0
      %1151 = vmatprep.subr.bf16.mxu0 0
      %1152 = vmatpush1.bf16.msra.mxu0 0
      %1153 = vmatprep.subr.bf16.mxu0 0
      %1154 = vmatpush1.bf16.msra.mxu0 0
      %1155 = vmatprep.subr.bf16.mxu0 0
      %1156 = vmatpush1.bf16.msra.mxu0 0
      %1157 = vmatprep.subr.bf16.mxu0 0
      %1158 = vmatpush1.bf16.msra.mxu0 0
      %1159 = vmatprep.subr.bf16.mxu0 0
      %1160 = vmatpush1.bf16.msra.mxu0 0
      %1161 = vmatprep.subr.bf16.mxu0 0
      %1162 = vmatpush1.bf16.msra.mxu0 0
      %1163 = vmatprep.subr.bf16.mxu0 0
      %1164 = vmatpush1.bf16.msra.mxu0 0
      %1165 = vmatprep.subr.bf16.mxu0 0
      %1166 = vmatpush1.bf16.msra.mxu0 0
      %1167 = vmatprep.subr.bf16.mxu0 0
      %1168 = vmatpush1.bf16.msra.mxu0 0
      %1169 = vmatprep.subr.bf16.mxu0 0
      %1170 = vmatpush1.bf16.msra.mxu0 0
      %1171 = vmatprep.mubr.bf16.mxu0 0
      %1172 = vmatmul.mubr.bf16.gmra.mrb[0].mxu0 %v1137
      %v1173 = vpop.f32.mrb[0].mxu0
      %v1174 = vadd.f32 0.0, %v1173
      %v1175 = vpop.f32.mrb[0].mxu0
      %v1176 = vadd.f32 0.0, %v1175
      %v1177 = vpop.f32.mrb[0].mxu0
      %v1178 = vadd.f32 0.0, %v1177
      %v1179 = vpop.f32.mrb[0].mxu0
      %v1180 = vadd.f32 0.0, %v1179
      %1181 = vdwg.mxu0
      %1182 = vmatprep.subr.bf16.mxu0 %v1116
      %1183 = vmatpush1.bf16.msra.mxu0 %v1115
      %1184 = vmatprep.subr.bf16.mxu0 %v1124
      %1185 = vmatpush1.bf16.msra.mxu0 %v1123
      %1186 = vmatprep.subr.bf16.mxu0 0
      %1187 = vmatpush1.bf16.msra.mxu0 0
      %1188 = vmatprep.subr.bf16.mxu0 0
      %1189 = vmatpush1.bf16.msra.mxu0 0
      %1190 = vmatprep.subr.bf16.mxu0 0
      %1191 = vmatpush1.bf16.msra.mxu0 0
      %1192 = vmatprep.subr.bf16.mxu0 0
      %1193 = vmatpush1.bf16.msra.mxu0 0
      %1194 = vmatprep.subr.bf16.mxu0 0
      %1195 = vmatpush1.bf16.msra.mxu0 0
      %1196 = vmatprep.subr.bf16.mxu0 0
      %1197 = vmatpush1.bf16.msra.mxu0 0
      %1198 = vmatprep.subr.bf16.mxu0 0
      %1199 = vmatpush1.bf16.msra.mxu0 0
      %1200 = vmatprep.subr.bf16.mxu0 0
      %1201 = vmatpush1.bf16.msra.mxu0 0
      %1202 = vmatprep.subr.bf16.mxu0 0
      %1203 = vmatpush1.bf16.msra.mxu0 0
      %1204 = vmatprep.subr.bf16.mxu0 0
      %1205 = vmatpush1.bf16.msra.mxu0 0
      %1206 = vmatprep.subr.bf16.mxu0 0
      %1207 = vmatpush1.bf16.msra.mxu0 0
      %1208 = vmatprep.subr.bf16.mxu0 0
      %1209 = vmatpush1.bf16.msra.mxu0 0
      %1210 = vmatprep.subr.bf16.mxu0 0
      %1211 = vmatpush1.bf16.msra.mxu0 0
      %1212 = vmatprep.subr.bf16.mxu0 0
      %1213 = vmatpush1.bf16.msra.mxu0 0
      %1214 = vmatprep.mubr.bf16.mxu0 0
      %1215 = vmatmul.mubr.bf16.gmra.mrb[0].mxu0 %v1137
      %v1216 = vpop.f32.mrb[0].mxu0
      %v1217 = vadd.f32 0.0, %v1216
      %v1218 = vpop.f32.mrb[0].mxu0
      %v1219 = vadd.f32 0.0, %v1218
      %v1220 = vpop.f32.mrb[0].mxu0
      %v1221 = vadd.f32 0.0, %v1220
      %v1222 = vpop.f32.mrb[0].mxu0
      %v1223 = vadd.f32 0.0, %v1222
      %1224 = vdwg.mxu0
      %1225 = vmatprep.subr.bf16.mxu0 %v1118
      %1226 = vmatpush1.bf16.msra.mxu0 %v1117
      %1227 = vmatprep.subr.bf16.mxu0 %v1126
      %1228 = vmatpush1.bf16.msra.mxu0 %v1125
      %1229 = vmatprep.subr.bf16.mxu0 0
      %1230 = vmatpush1.bf16.msra.mxu0 0
      %1231 = vmatprep.subr.bf16.mxu0 0
      %1232 = vmatpush1.bf16.msra.mxu0 0
      %1233 = vmatprep.subr.bf16.mxu0 0
      %1234 = vmatpush1.bf16.msra.mxu0 0
      %1235 = vmatprep.subr.bf16.mxu0 0
      %1236 = vmatpush1.bf16.msra.mxu0 0
      %1237 = vmatprep.subr.bf16.mxu0 0
      %1238 = vmatpush1.bf16.msra.mxu0 0
      %1239 = vmatprep.subr.bf16.mxu0 0
      %1240 = vmatpush1.bf16.msra.mxu0 0
      %1241 = vmatprep.subr.bf16.mxu0 0
      %1242 = vmatpush1.bf16.msra.mxu0 0
      %1243 = vmatprep.subr.bf16.mxu0 0
      %1244 = vmatpush1.bf16.msra.mxu0 0
      %1245 = vmatprep.subr.bf16.mxu0 0
      %1246 = vmatpush1.bf16.msra.mxu0 0
      %1247 = vmatprep.subr.bf16.mxu0 0
      %1248 = vmatpush1.bf16.msra.mxu0 0
      %1249 = vmatprep.subr.bf16.mxu0 0
      %1250 = vmatpush1.bf16.msra.mxu0 0
      %1251 = vmatprep.subr.bf16.mxu0 0
      %1252 = vmatpush1.bf16.msra.mxu0 0
      %1253 = vmatprep.subr.bf16.mxu0 0
      %1254 = vmatpush1.bf16.msra.mxu0 0
      %1255 = vmatprep.subr.bf16.mxu0 0
      %1256 = vmatpush1.bf16.msra.mxu0 0
      %1257 = vmatprep.mubr.bf16.mxu0 0
      %1258 = vmatmul.mubr.bf16.gmra.mrb[0].mxu0 %v1137
      %v1259 = vpop.f32.mrb[0].mxu0
      %v1260 = vadd.f32 0.0, %v1259
      %v1261 = vpop.f32.mrb[0].mxu0
      %v1262 = vadd.f32 0.0, %v1261
      %v1263 = vpop.f32.mrb[0].mxu0
      %v1264 = vadd.f32 0.0, %v1263
      %v1265 = vpop.f32.mrb[0].mxu0
      %v1266 = vadd.f32 0.0, %v1265
      %1267 = vdwg.mxu0
      %1268 = vmatprep.subr.bf16.mxu0 %v1120
      %1269 = vmatpush1.bf16.msra.mxu0 %v1119
      %1270 = vmatprep.subr.bf16.mxu0 %v1128
      %1271 = vmatpush1.bf16.msra.mxu0 %v1127
      %1272 = vmatprep.subr.bf16.mxu0 0
      %1273 = vmatpush1.bf16.msra.mxu0 0
      %1274 = vmatprep.subr.bf16.mxu0 0
      %1275 = vmatpush1.bf16.msra.mxu0 0
      %1276 = vmatprep.subr.bf16.mxu0 0
      %1277 = vmatpush1.bf16.msra.mxu0 0
      %1278 = vmatprep.subr.bf16.mxu0 0
      %1279 = vmatpush1.bf16.msra.mxu0 0
      %1280 = vmatprep.subr.bf16.mxu0 0
      %1281 = vmatpush1.bf16.msra.mxu0 0
      %1282 = vmatprep.subr.bf16.mxu0 0
      %1283 = vmatpush1.bf16.msra.mxu0 0
      %1284 = vmatprep.subr.bf16.mxu0 0
      %1285 = vmatpush1.bf16.msra.mxu0 0
      %1286 = vmatprep.subr.bf16.mxu0 0
      %1287 = vmatpush1.bf16.msra.mxu0 0
      %1288 = vmatprep.subr.bf16.mxu0 0
      %1289 = vmatpush1.bf16.msra.mxu0 0
      %1290 = vmatprep.subr.bf16.mxu0 0
      %1291 = vmatpush1.bf16.msra.mxu0 0
      %1292 = vmatprep.subr.bf16.mxu0 0
      %1293 = vmatpush1.bf16.msra.mxu0 0
      %1294 = vmatprep.subr.bf16.mxu0 0
      %1295 = vmatpush1.bf16.msra.mxu0 0
      %1296 = vmatprep.subr.bf16.mxu0 0
      %1297 = vmatpush1.bf16.msra.mxu0 0
      %1298 = vmatprep.subr.bf16.mxu0 0
      %1299 = vmatpush1.bf16.msra.mxu0 0
      %1300 = vmatprep.mubr.bf16.mxu0 0
      %1301 = vmatmul.mubr.bf16.gmra.mrb[0].mxu0 %v1137
      %v1302 = vpop.f32.mrb[0].mxu0
      %v1303 = vadd.f32 0.0, %v1302
      %v1304 = vpop.f32.mrb[0].mxu0
      %v1305 = vadd.f32 0.0, %v1304
      %v1306 = vpop.f32.mrb[0].mxu0
      %v1307 = vadd.f32 0.0, %v1306
      %v1308 = vpop.f32.mrb[0].mxu0
      %v1309 = vadd.f32 0.0, %v1308
      %1310 = vdwg.mxu0
      %1319 = vrot.lane.b32.xlu0 %v1178, 1
      %v1320 = vpop.permute.xlu0 %1319
      %1321 = vrot.lane.b32.xlu0 %v1180, 1
      %v1322 = vpop.permute.xlu0 %1321
      %1323 = vrot.lane.b32.xlu0 %v1221, 1
      %v1324 = vpop.permute.xlu0 %1323
      %1325 = vrot.lane.b32.xlu0 %v1223, 1
      %v1326 = vpop.permute.xlu0 %1325
      %1327 = vrot.lane.b32.xlu0 %v1264, 1
      %v1328 = vpop.permute.xlu0 %1327
      %1329 = vrot.lane.b32.xlu0 %v1266, 1
      %v1330 = vpop.permute.xlu0 %1329
      %1331 = vrot.lane.b32.xlu0 %v1307, 1
      %v1332 = vpop.permute.xlu0 %1331
      %1333 = vrot.lane.b32.xlu0 %v1309, 1
      %v1334 = vpop.permute.xlu0 %1333
      %vm1335 = vcmask 7168
      %v1336 = vsel %vm1335, %v1320, %v1322
      %v1337 = vsel %vm1335, %v1322, %v1324
      %v1338 = vsel %vm1335, %v1324, %v1326
      %v1339 = vsel %vm1335, %v1326, %v1328
      %v1340 = vsel %vm1335, %v1328, %v1330
      %v1341 = vsel %vm1335, %v1330, %v1332
      %v1342 = vsel %vm1335, %v1332, %v1334
      %v1351 = vsel %vm1335, 0.0, %v1320
      %v1352 = vadd.f32 %v1174, %v1351
      %v1353 = vadd.f32 %v1176, %v1336
      %v1354 = vadd.f32 %v1217, %v1337
      %v1355 = vadd.f32 %v1219, %v1338
      %v1356 = vadd.f32 %v1260, %v1339
      %v1357 = vadd.f32 %v1262, %v1340
      %v1358 = vadd.f32 %v1303, %v1341
      %v1359 = vadd.f32 %v1305, %v1342
      %1360 = vst [vmem:[%s345] sm:$0xff] %v1352
      %1361 = vst [vmem:[%s345 + $0x8] sm:$0xff] %v1353
      %1362 = vst [vmem:[%s345 + $0x10] sm:$0xff] %v1354
      %1363 = vst [vmem:[%s345 + $0x18] sm:$0xff] %v1355
      %1364 = vst [vmem:[%s345 + $0x20] sm:$0xff] %v1356
      %1365 = vst [vmem:[%s345 + $0x28] sm:$0xff] %v1357
      %1366 = vst [vmem:[%s345 + $0x30] sm:$0xff] %v1358
      %1367 = vst [vmem:[%s345 + $0x38] sm:$0xff] %v1359
      %1369 = vst.msk [vmem:[%s349] sm:$0xff] %vm1335, %v1334
      %p1370 = scmp.lt.s32.totalorder %s19, 1
      %s1371 = scalar_select %p1370, %s19, 1
      %s1372 = smul.addr %s1371, 8
      %s1373 = smul.addr %s1372, 8
      %s1374 = scalar_lea.vmem %s6, %s1373
      %p1375 = scmp.lt.s32.totalorder %s19, 1
      %s1376 = scalar_select %p1375, %s19, 1
      %s1377 = smul.addr %s1376, 8
      %s1378 = scalar_lea.vmem %s7, %s1377
      // Predicated region
      $region45: #{mossformer_forward.3} parent=43 // pred_check
        %p1379 = pneg %p183
      $region46: #{mossformer_forward.3} parent=43 // pred_check_branch
        %1381 = sbr.rel (%p1379) target = $region48
      $region47: #{mossformer_forward.3} parent=43 // pred_region
        _
      $region48: #{mossformer_forward.3} parent=43 // pred_fallthru
        _
      // Predicated region
      $region49: #{mossformer_forward.3} parent=43 // pred_check
        %p1382 = pneg %p209
      $region50: #{mossformer_forward.3} parent=43 // pred_check_branch
        %1384 = sbr.rel (%p1382) target = $region52
      $region51: #{mossformer_forward.3} parent=43 // pred_region
        _
      $region52: #{mossformer_forward.3} parent=43 // pred_fallthru
        _
    $region44: #{mossformer_forward.3} parent=5 // pred_fallthru
      _
    %p1385 = scmp.le.s32.totalorder 2, %s14
    // Predicated region
    $region53: #{mossformer_forward.3} parent=5 // pred_check
      %p1386 = pneg %p1385
    $region54: #{mossformer_forward.3} parent=5 // pred_check_branch
      %1388 = sbr.rel (%p1386) target = $region56
    $region55: #{mossformer_forward.3} parent=5 // pred_region
      %s1389 = ssub.s32 %s14, 2
      // Predicated region
      $region57: #{mossformer_forward.3} parent=55 // pred_check
        %p1390 = pneg %p189
      $region58: #{mossformer_forward.3} parent=55 // pred_check_branch
        %1392 = sbr.rel (%p1390) target = $region60
      $region59: #{mossformer_forward.3} parent=55 // pred_region
        %p1393 = scmp.lt.s32.totalorder %s20, 1
        %s1394 = scalar_select %p1393, %s20, 1
        %s1395 = smul.addr %s1394, 8
        %s1396 = smul.addr %s1395, 8
        %s1397 = scalar_lea.vmem %s6, %s1396
      $region60: #{mossformer_forward.3} parent=55 // pred_fallthru
        _
      // Predicated region
      $region61: #{mossformer_forward.3} parent=55 // pred_check
        %p1398 = pneg %p215
      $region62: #{mossformer_forward.3} parent=55 // pred_check_branch
        %1400 = sbr.rel (%p1398) target = $region64
      $region63: #{mossformer_forward.3} parent=55 // pred_region
        %p1401 = scmp.lt.s32.totalorder %s20, 1
        %s1402 = scalar_select %p1401, %s20, 1
        %s1403 = smul.addr %s1402, 8
        %s1404 = scalar_lea.vmem %s7, %s1403
      $region64: #{mossformer_forward.3} parent=55 // pred_fallthru
        _
    $region56: #{mossformer_forward.3} parent=5 // pred_fallthru
      _
  $region6: #{mossformer_forward.3} parent=0 // loop_footer
    %s18 = sadd.s32 1, %s14
  $region7: #{mossformer_forward.3} parent=0 // loop_footer_branch
    %13 = sbr.rel target = $region3
  $region8: #{mossformer_forward.3} parent=0 // loop_exit
    _

</llo_original>
